<compile_context>
chip_gen: v6e
topology: v6e:2x2x1
jax: 0.10.0
libtpu: 0.0.40
codegen_flags: <defaults>
</compile_context>

<pallas_src>
import functools

import jax
import jax.numpy as jnp
from jax import lax
from jax.experimental import pallas as pl
from jax.experimental.pallas import tpu as pltpu

LANE = 128     # lane width: hidden/output feature axes padded to this
SUBLANE = 8    # sublane width: batch-tile granularity when tiling the batch


def _round_up(x, m):
    return (x + m - 1) // m * m


def _layernorm(h, gamma, beta, d_real, eps=1e-5):
    """LayerNorm over the last axis with statistics over the first d_real lanes.

    Relies on padded lanes of `h` being exactly zero (true after a zero-padded
    matmul + zero-padded bias): sum(h) and sum(h*h) over all lanes then equal
    the sums over the real lanes, so no lane mask is needed.  Padded output
    lanes are zeroed by the zero-padded gamma/beta.
    """
    inv_d = jnp.float32(1.0 / d_real)
    mean = jnp.sum(h, axis=-1, keepdims=True) * inv_d
    ex2 = jnp.sum(h * h, axis=-1, keepdims=True) * inv_d
    var = ex2 - mean * mean
    return (h - mean) * lax.rsqrt(var + eps) * gamma + beta


def actor_kernel(x_ref, w1_ref, w2_ref, w3_ref, vec_ref, o_ref,
                 *, d1_real, d2_real):
    d1 = w1_ref.shape[1]      # padded fc1 width
    d2 = w2_ref.shape[1]      # padded fc2 width
    na = w3_ref.shape[1]      # padded action width
    in_dim = x_ref.shape[-1]  # real observation width (unpadded)

    x = x_ref[...]
    vec = vec_ref[...]        # (8, P) packed vectors, one vreg tile
    b1, g1, be1 = vec[0:1, :d1], vec[1:2, :d1], vec[2:3, :d1]
    b2, g2, be2 = vec[3:4, :d2], vec[4:5, :d2], vec[5:6, :d2]
    b3 = vec[6:7, :na]

    # fc1 -> LayerNorm -> ReLU
    if in_dim <= 16:
        # Tiny observation dim: unrolled rank-1 updates on the VPU instead of a
        # K<<128 MXU matmul with a 2-4 lane operand.
        h = b1
        for k in range(in_dim):
            h = h + x[:, k:k + 1] * w1_ref[k:k + 1, :]
    else:
        h = jnp.dot(x, w1_ref[...], preferred_element_type=jnp.float32) + b1
    h = _layernorm(h, g1, be1, d1_real)
    h = jnp.maximum(h, 0.0)

    # fc2 -> LayerNorm -> ReLU
    h = jnp.dot(h, w2_ref[...], preferred_element_type=jnp.float32) + b2
    h = _layernorm(h, g2, be2, d2_real)
    h = jnp.maximum(h, 0.0)

    # mu -> tanh (padded action lanes stay exactly 0; sliced off outside)
    h = jnp.dot(h, w3_ref[...], preferred_element_type=jnp.float32) + b3
    o_ref[...] = jnp.tanh(h)


def _default_num_batch_tiles():
    """One tile per TensorCore: 2 on dual-TC v7x chips, otherwise 1."""
    try:
        kind = jax.devices()[0].device_kind.lower()
        if "v7" in kind:
            return 2
    except Exception:
        pass
    return 1


def actor_forward(state, padded_params, dims, *, num_batch_tiles=None):
    """state: (B, input_dims) f32 (unpadded). padded_params/dims from pad_params()."""
    p = padded_params
    if num_batch_tiles is None:
        num_batch_tiles = _default_num_batch_tiles()

    B, in_dim = state.shape
    d1_pad = p["w1"].shape[1]
    d2_pad = p["w2"].shape[1]
    na_pad = p["w3"].shape[1]
    vec_rows, vec_cols = p["vec"].shape

    x = state.astype(jnp.float32)
    if num_batch_tiles <= 1 or B < SUBLANE * num_batch_tiles:
        # Single grid step (v5e/v6e single-TC): block == full array, so the
        # batch needs no padding and there is no per-step grid overhead.
        tb, b_pad = B, B
    else:
        # One big tile per TensorCore (v7x): tb rows each, batch padded to tb.
        tb = _round_up(pl.cdiv(B, num_batch_tiles), SUBLANE)
        b_pad = _round_up(B, tb)
        if b_pad != B:
            x = jnp.pad(x, ((0, b_pad - B), (0, 0)))
    grid = (b_pad // tb,)

    def param_spec(arr):
        # Constant block index -> parameter DMA'd into VMEM once, stays resident.
        return pl.BlockSpec(arr.shape, lambda i: (0, 0))

    kernel = functools.partial(actor_kernel,
                               d1_real=dims["fc1"], d2_real=dims["fc2"])

    flops = 2 * b_pad * (in_dim * d1_pad + d1_pad * d2_pad + d2_pad * na_pad)
    bytes_accessed = 4 * (b_pad * in_dim + in_dim * d1_pad + d1_pad * d2_pad
                          + d2_pad * na_pad + vec_rows * vec_cols + b_pad * na_pad)
    cost = pl.CostEstimate(flops=flops,
                           transcendentals=b_pad * (2 + na_pad),
                           bytes_accessed=bytes_accessed)

    out = pl.pallas_call(
        kernel,
        out_shape=jax.ShapeDtypeStruct((b_pad, na_pad), jnp.float32),
        grid_spec=pltpu.PrefetchScalarGridSpec(
            num_scalar_prefetch=0,
            grid=grid,
            in_specs=[
                pl.BlockSpec((tb, in_dim), lambda i: (i, 0)),   # state tile
                param_spec(p["w1"]),
                param_spec(p["w2"]),
                param_spec(p["w3"]),
                param_spec(p["vec"]),
            ],
            out_specs=pl.BlockSpec((tb, na_pad), lambda i: (i, 0)),
        ),
        compiler_params=pltpu.CompilerParams(
            dimension_semantics=("parallel",)),   # v7x: shard batch over 2 TCs
        cost_estimate=cost,
    )(x, p["w1"], p["w2"], p["w3"], p["vec"])

    return out[:B, :dims["n_actions"]]


def init_params(key, input_dims, fc_dims, n_actions):
    """Real (unpadded) params mirroring ActorNetwork.__init__ uniform ranges.

    Note: the PyTorch code uses weight.size()[0] == out_features for f1/f2,
    reproduced faithfully. Weights stored transposed: (in_features, out_features).
    """
    k1, k2, k3, k4, k5, k6 = jax.random.split(key, 6)
    f1 = 1.0 / jnp.sqrt(jnp.float32(fc_dims[0]))
    f2 = 1.0 / jnp.sqrt(jnp.float32(fc_dims[1]))
    f3 = 0.003

    def U(k, shape, lim):
        return jax.random.uniform(k, shape, jnp.float32, -lim, lim)

    return {
        "w1": U(k1, (input_dims, fc_dims[0]), f1),
        "b1": U(k2, (1, fc_dims[0]), f1),
        "g1": jnp.ones((1, fc_dims[0]), jnp.float32),    # LayerNorm weight
        "be1": jnp.zeros((1, fc_dims[0]), jnp.float32),  # LayerNorm bias
        "w2": U(k3, (fc_dims[0], fc_dims[1]), f2),
        "b2": U(k4, (1, fc_dims[1]), f2),
        "g2": jnp.ones((1, fc_dims[1]), jnp.float32),
        "be2": jnp.zeros((1, fc_dims[1]), jnp.float32),
        "w3": U(k5, (fc_dims[1], n_actions), f3),
        "b3": U(k6, (1, n_actions), f3),
    }


def pad_params(p, input_dims, fc_dims, n_actions):
    """Zero-pad hidden/output feature axes to the lane width ONCE and pack the
    seven bias/LN vectors into a single (8, P) tile.

    NOTE: the kernel's unmasked LayerNorm relies on padded lanes of w2/w3 and
    of every packed vector row being EXACTLY zero.  If an optimizer ever
    updates the padded arrays directly, re-zero the pads after every step.
    """
    d1_pad = _round_up(fc_dims[0], LANE)
    d2_pad = _round_up(fc_dims[1], LANE)
    na_pad = _round_up(n_actions, LANE)
    pv = max(d1_pad, d2_pad, na_pad)

    def pad2(a, rows, cols):
        return jnp.pad(a, ((0, rows - a.shape[0]), (0, cols - a.shape[1])))

    def vrow(a):
        a = a.reshape(1, -1)
        return jnp.pad(a, ((0, 0), (0, pv - a.shape[-1])))

    vec = jnp.concatenate([
        vrow(p["b1"]), vrow(p["g1"]), vrow(p["be1"]),
        vrow(p["b2"]), vrow(p["g2"]), vrow(p["be2"]),
        vrow(p["b3"]), jnp.zeros((1, pv), jnp.float32),   # spare row -> 8 sublanes
    ], axis=0)

    padded = {
        "w1": pad2(p["w1"], input_dims, d1_pad),   # rows stay at real input_dims
        "w2": pad2(p["w2"], d1_pad, d2_pad),
        "w3": pad2(p["w3"], d2_pad, na_pad),
        "vec": vec,
    }
    dims = {"input_dims": input_dims, "fc1": fc_dims[0], "fc2": fc_dims[1],
            "n_actions": n_actions}
    return padded, dims


def actor_forward_ref(state, p):
    """Pure-JAX reference on the real (unpadded) params."""
    def ln(h, g, b, eps=1e-5):
        mean = jnp.mean(h, axis=-1, keepdims=True)
        var = jnp.mean((h - mean) ** 2, axis=-1, keepdims=True)
        return (h - mean) * lax.rsqrt(var + eps) * g + b

    h = state @ p["w1"] + p["b1"]
    h = jnp.maximum(ln(h, p["g1"], p["be1"]), 0.0)
    h = h @ p["w2"] + p["b2"]
    h = jnp.maximum(ln(h, p["g2"], p["be2"]), 0.0)
    return jnp.tanh(h @ p["w3"] + p["b3"])


# TODO(synk): the Adam optimizer / training step of ActorNetwork has no Pallas
# equivalent here; only the forward pass is implemented.  Any optimizer acting
# on the padded params must re-zero the padded lanes after each update.

if __name__ == "__main__":
    # MountainCarContinuous-style shapes: obs dim 2, fc_dims=(32, 32), 1 action.
    # Batch 256 (a rollout of env states) so the resident-weight path and the
    # per-TC batch tiling are actually exercised.
    batch, input_dims, fc_dims, n_actions = 256, 2, (32, 32), 1

    key = jax.random.PRNGKey(0)
    kp, kx = jax.random.split(key)
    real_params = init_params(kp, input_dims, fc_dims, n_actions)
    padded_params, dims = pad_params(real_params, input_dims, fc_dims, n_actions)
    state = jax.random.normal(kx, (batch, input_dims), jnp.float32)

    ref = actor_forward_ref(state, real_params)

    # Default tiling (1 grid step on v5e/v6e, 2 tiles on dual-TC v7x).
    out = jax.block_until_ready(actor_forward(state, padded_params, dims))
    assert out.shape == (batch, n_actions)
    assert jnp.allclose(out, ref, atol=1e-5, rtol=1e-5), "mismatch vs reference"

    # Explicit dual-tile path (what v7x uses) — exercised for correctness.
    out2 = jax.block_until_ready(
        actor_forward(state, padded_params, dims, num_batch_tiles=2))
    assert jnp.allclose(out2, ref, atol=1e-5, rtol=1e-5), "mismatch (2-tile path)"

    print("KERNEL_OK")
</pallas_src>

<mosaic_0001>
module attributes {stable_mosaic.version = 11 : i64} {
  func.func @actor_kernel(%arg0: i32, %arg1: memref<256x2xf32, #tpu.memory_space<vmem>>, %arg2: memref<2x128xf32, #tpu.memory_space<vmem>>, %arg3: memref<128x128xf32, #tpu.memory_space<vmem>>, %arg4: memref<128x128xf32, #tpu.memory_space<vmem>>, %arg5: memref<8x128xf32, #tpu.memory_space<vmem>>, %arg6: memref<256x128xf32, #tpu.memory_space<vmem>>) attributes {dimension_semantics = [#tpu.dimension_semantics<parallel>], iteration_bounds = array<i64: 1>, scalar_prefetch = 0 : i64, scratch_operands = 0 : i64, tpu.core_type = #tpu.core_type<tc>, window_params = [{transform_indices = @transform_0, window_bounds = array<i64: 256, 2>}, {pipeline_mode = #tpu.pipeline_mode<synchronous>, transform_indices = @transform_1, window_bounds = array<i64: 2, 128>}, {pipeline_mode = #tpu.pipeline_mode<synchronous>, transform_indices = @transform_2, window_bounds = array<i64: 128, 128>}, {pipeline_mode = #tpu.pipeline_mode<synchronous>, transform_indices = @transform_3, window_bounds = array<i64: 128, 128>}, {pipeline_mode = #tpu.pipeline_mode<synchronous>, transform_indices = @transform_4, window_bounds = array<i64: 8, 128>}, {transform_indices = @transform_5, window_bounds = array<i64: 256, 128>}]} {
    %c0 = arith.constant 0 : index
    %c0_0 = arith.constant 0 : index
    %0 = vector.load %arg1[%c0, %c0_0] : memref<256x2xf32, #tpu.memory_space<vmem>>, vector<256x2xf32>
    %c0_1 = arith.constant 0 : index
    %c0_2 = arith.constant 0 : index
    %1 = vector.load %arg5[%c0_1, %c0_2] : memref<8x128xf32, #tpu.memory_space<vmem>>, vector<8x128xf32>
    %2 = vector.extract_strided_slice %1 {offsets = [0, 0], sizes = [1, 128], strides = [1, 1]} : vector<8x128xf32> to vector<1x128xf32>
    %3 = vector.extract_strided_slice %1 {offsets = [1, 0], sizes = [1, 128], strides = [1, 1]} : vector<8x128xf32> to vector<1x128xf32>
    %4 = vector.extract_strided_slice %1 {offsets = [2, 0], sizes = [1, 128], strides = [1, 1]} : vector<8x128xf32> to vector<1x128xf32>
    %5 = vector.extract_strided_slice %1 {offsets = [3, 0], sizes = [1, 128], strides = [1, 1]} : vector<8x128xf32> to vector<1x128xf32>
    %6 = vector.extract_strided_slice %1 {offsets = [4, 0], sizes = [1, 128], strides = [1, 1]} : vector<8x128xf32> to vector<1x128xf32>
    %7 = vector.extract_strided_slice %1 {offsets = [5, 0], sizes = [1, 128], strides = [1, 1]} : vector<8x128xf32> to vector<1x128xf32>
    %8 = vector.extract_strided_slice %1 {offsets = [6, 0], sizes = [1, 128], strides = [1, 1]} : vector<8x128xf32> to vector<1x128xf32>
    %9 = vector.extract_strided_slice %0 {offsets = [0, 0], sizes = [256, 1], strides = [1, 1]} : vector<256x2xf32> to vector<256x1xf32>
    %c0_3 = arith.constant 0 : index
    %c0_4 = arith.constant 0 : index
    %10 = vector.load %arg2[%c0_3, %c0_4] : memref<2x128xf32, #tpu.memory_space<vmem>>, vector<1x128xf32>
    %11 = vector.broadcast %9 : vector<256x1xf32> to vector<256x128xf32>
    %12 = vector.broadcast %10 : vector<1x128xf32> to vector<256x128xf32>
    %13 = arith.mulf %11, %12 : vector<256x128xf32>
    %14 = vector.broadcast %2 : vector<1x128xf32> to vector<256x128xf32>
    %15 = arith.addf %14, %13 : vector<256x128xf32>
    %16 = vector.extract_strided_slice %0 {offsets = [0, 1], sizes = [256, 1], strides = [1, 1]} : vector<256x2xf32> to vector<256x1xf32>
    %c1 = arith.constant 1 : index
    %c0_5 = arith.constant 0 : index
    %17 = vector.load %arg2[%c1, %c0_5] : memref<2x128xf32, #tpu.memory_space<vmem>>, vector<1x128xf32>
    %18 = vector.broadcast %16 : vector<256x1xf32> to vector<256x128xf32>
    %19 = vector.broadcast %17 : vector<1x128xf32> to vector<256x128xf32>
    %20 = arith.mulf %18, %19 : vector<256x128xf32>
    %21 = arith.addf %15, %20 : vector<256x128xf32>
    %cst = arith.constant dense<0.000000e+00> : vector<256xf32>
    %22 = vector.multi_reduction <add>, %21, %cst [1] : vector<256x128xf32> to vector<256xf32>
    %23 = vector.shape_cast %22 : vector<256xf32> to vector<256x1xf32>
    %cst_6 = arith.constant 3.125000e-02 : f32
    %24 = vector.broadcast %cst_6 : f32 to vector<256x1xf32>
    %25 = arith.mulf %23, %24 : vector<256x1xf32>
    %26 = arith.mulf %21, %21 : vector<256x128xf32>
    %cst_7 = arith.constant dense<0.000000e+00> : vector<256xf32>
    %27 = vector.multi_reduction <add>, %26, %cst_7 [1] : vector<256x128xf32> to vector<256xf32>
    %28 = vector.shape_cast %27 : vector<256xf32> to vector<256x1xf32>
    %cst_8 = arith.constant 3.125000e-02 : f32
    %29 = vector.broadcast %cst_8 : f32 to vector<256x1xf32>
    %30 = arith.mulf %28, %29 : vector<256x1xf32>
    %31 = arith.mulf %25, %25 : vector<256x1xf32>
    %32 = arith.subf %30, %31 : vector<256x1xf32>
    %33 = vector.broadcast %25 : vector<256x1xf32> to vector<256x128xf32>
    %34 = arith.subf %21, %33 : vector<256x128xf32>
    %cst_9 = arith.constant 9.99999974E-6 : f32
    %35 = vector.broadcast %cst_9 : f32 to vector<256x1xf32>
    %36 = arith.addf %32, %35 : vector<256x1xf32>
    %37 = math.rsqrt %36 : vector<256x1xf32>
    %38 = vector.broadcast %37 : vector<256x1xf32> to vector<256x128xf32>
    %39 = arith.mulf %34, %38 : vector<256x128xf32>
    %40 = vector.broadcast %3 : vector<1x128xf32> to vector<256x128xf32>
    %41 = arith.mulf %39, %40 : vector<256x128xf32>
    %42 = vector.broadcast %4 : vector<1x128xf32> to vector<256x128xf32>
    %43 = arith.addf %41, %42 : vector<256x128xf32>
    %cst_10 = arith.constant 0.000000e+00 : f32
    %44 = vector.broadcast %cst_10 : f32 to vector<256x128xf32>
    %45 = arith.maximumf %43, %44 : vector<256x128xf32>
    %c0_11 = arith.constant 0 : index
    %c0_12 = arith.constant 0 : index
    %46 = vector.load %arg3[%c0_11, %c0_12] : memref<128x128xf32, #tpu.memory_space<vmem>>, vector<128x128xf32>
    %cst_13 = arith.constant dense<0.000000e+00> : vector<256x128xf32>
    %47 = tpu.matmul %45, %46, %cst_13 {dimension_numbers = #tpu.dot_dimension_numbers<[1], [0], [0], [1], [0, 0, 1, 1], [], []>} : vector<256x128xf32>, vector<128x128xf32>, vector<256x128xf32> -> vector<256x128xf32>
    %48 = vector.broadcast %5 : vector<1x128xf32> to vector<256x128xf32>
    %49 = arith.addf %47, %48 : vector<256x128xf32>
    %cst_14 = arith.constant dense<0.000000e+00> : vector<256xf32>
    %50 = vector.multi_reduction <add>, %49, %cst_14 [1] : vector<256x128xf32> to vector<256xf32>
    %51 = vector.shape_cast %50 : vector<256xf32> to vector<256x1xf32>
    %cst_15 = arith.constant 3.125000e-02 : f32
    %52 = vector.broadcast %cst_15 : f32 to vector<256x1xf32>
    %53 = arith.mulf %51, %52 : vector<256x1xf32>
    %54 = arith.mulf %49, %49 : vector<256x128xf32>
    %cst_16 = arith.constant dense<0.000000e+00> : vector<256xf32>
    %55 = vector.multi_reduction <add>, %54, %cst_16 [1] : vector<256x128xf32> to vector<256xf32>
    %56 = vector.shape_cast %55 : vector<256xf32> to vector<256x1xf32>
    %cst_17 = arith.constant 3.125000e-02 : f32
    %57 = vector.broadcast %cst_17 : f32 to vector<256x1xf32>
    %58 = arith.mulf %56, %57 : vector<256x1xf32>
    %59 = arith.mulf %53, %53 : vector<256x1xf32>
    %60 = arith.subf %58, %59 : vector<256x1xf32>
    %61 = vector.broadcast %53 : vector<256x1xf32> to vector<256x128xf32>
    %62 = arith.subf %49, %61 : vector<256x128xf32>
    %cst_18 = arith.constant 9.99999974E-6 : f32
    %63 = vector.broadcast %cst_18 : f32 to vector<256x1xf32>
    %64 = arith.addf %60, %63 : vector<256x1xf32>
    %65 = math.rsqrt %64 : vector<256x1xf32>
    %66 = vector.broadcast %65 : vector<256x1xf32> to vector<256x128xf32>
    %67 = arith.mulf %62, %66 : vector<256x128xf32>
    %68 = vector.broadcast %6 : vector<1x128xf32> to vector<256x128xf32>
    %69 = arith.mulf %67, %68 : vector<256x128xf32>
    %70 = vector.broadcast %7 : vector<1x128xf32> to vector<256x128xf32>
    %71 = arith.addf %69, %70 : vector<256x128xf32>
    %cst_19 = arith.constant 0.000000e+00 : f32
    %72 = vector.broadcast %cst_19 : f32 to vector<256x128xf32>
    %73 = arith.maximumf %71, %72 : vector<256x128xf32>
    %c0_20 = arith.constant 0 : index
    %c0_21 = arith.constant 0 : index
    %74 = vector.load %arg4[%c0_20, %c0_21] : memref<128x128xf32, #tpu.memory_space<vmem>>, vector<128x128xf32>
    %cst_22 = arith.constant dense<0.000000e+00> : vector<256x128xf32>
    %75 = tpu.matmul %73, %74, %cst_22 {dimension_numbers = #tpu.dot_dimension_numbers<[1], [0], [0], [1], [0, 0, 1, 1], [], []>} : vector<256x128xf32>, vector<128x128xf32>, vector<256x128xf32> -> vector<256x128xf32>
    %76 = vector.broadcast %8 : vector<1x128xf32> to vector<256x128xf32>
    %77 = arith.addf %75, %76 : vector<256x128xf32>
    %78 = math.tanh %77 : vector<256x128xf32>
    %c0_23 = arith.constant 0 : index
    %c0_24 = arith.constant 0 : index
    %79 = vector.load %arg6[%c0_23, %c0_24] : memref<256x128xf32, #tpu.memory_space<vmem>>, vector<256x128xf32>
    tpu.vector_store %arg6[%c0_23, %c0_24], %78 {strides = array<i32>} : memref<256x128xf32, #tpu.memory_space<vmem>>, vector<256x128xf32>,
    return
  }
  func.func @transform_0(%arg0: i32) -> (i32, i32) {
    %c0_i32 = arith.constant 0 : i32
    %c0_i32_0 = arith.constant 0 : i32
    return %arg0, %c0_i32 : i32, i32
  }
  func.func @transform_1(%arg0: i32) -> (i32, i32) {
    %c0_i32 = arith.constant 0 : i32
    %c0_i32_0 = arith.constant 0 : i32
    %c0_i32_1 = arith.constant 0 : i32
    return %c0_i32, %c0_i32_0 : i32, i32
  }
  func.func @transform_2(%arg0: i32) -> (i32, i32) {
    %c0_i32 = arith.constant 0 : i32
    %c0_i32_0 = arith.constant 0 : i32
    %c0_i32_1 = arith.constant 0 : i32
    return %c0_i32, %c0_i32_0 : i32, i32
  }
  func.func @transform_3(%arg0: i32) -> (i32, i32) {
    %c0_i32 = arith.constant 0 : i32
    %c0_i32_0 = arith.constant 0 : i32
    %c0_i32_1 = arith.constant 0 : i32
    return %c0_i32, %c0_i32_0 : i32, i32
  }
  func.func @transform_4(%arg0: i32) -> (i32, i32) {
    %c0_i32 = arith.constant 0 : i32
    %c0_i32_0 = arith.constant 0 : i32
    %c0_i32_1 = arith.constant 0 : i32
    return %c0_i32, %c0_i32_0 : i32, i32
  }
  func.func @transform_5(%arg0: i32) -> (i32, i32) {
    %c0_i32 = arith.constant 0 : i32
    %c0_i32_0 = arith.constant 0 : i32
    return %arg0, %c0_i32 : i32, i32
  }
}

</mosaic_0001>

<llo_original>
// kernel: tpu_custom_call.1
$region0: #{tpu_custom_call.1}
  #allocation0 [shape = 'u32[]', space=smem, size = 0x4, offset = 0x4, fixed_abs, tag = 'smem constant byte address 0x4 - core index']
  #allocation1 [shape = 'u32[144,128]{1,0:T(1,128)}', space=vmem, size = 0x12000, scoped, tag = 'internal scratch']
  %s0 = inlined_call_operand.vmem [shape: f32[256,2], index: 0, kind: input, shape index: {}]
  %s1 = inlined_call_operand.vmem [shape: f32[2,128], index: 1, kind: input, shape index: {}]
  %s2 = inlined_call_operand.vmem [shape: f32[128,128], index: 2, kind: input, shape index: {}]
  %s3 = inlined_call_operand.vmem [shape: f32[128,128], index: 3, kind: input, shape index: {}]
  %s4 = inlined_call_operand.vmem [shape: f32[8,128], index: 4, kind: input, shape index: {}]
  %s5 = inlined_call_operand.hbm [shape: f32[256,128], index: 5, kind: output, shape index: {}]
  %s6 = sld [smem:[#allocation0]]
  $region30: #{tpu_custom_call.1} parent=0
    _
  %s8 = ssub.s32 1, %s6
  %s9 = scalar_select 0, %s8, %s6
  $region1: #{tpu_custom_call.1} parent=0
    #allocation2 [shape = 'u8[131072]{0}', space=vmem, size = 0x20000, scoped, tag = 'output window, operand 0, single buffered']
    #allocation3 [shape = 's32[1]{0}', space=sflag, size = 0x4, scoped, tag = 'scoped memory for tpu_custom_call.1']
    %10 = vsyncpa [#allocation3], 0
    // Predicated region
    $region2: #{tpu_custom_call.1} parent=1 // pred_check
      _
    $region3: #{tpu_custom_call.1} parent=1 // pred_check_branch
      %12 = sbr.rel (0) target = $region5
    $region4: #{tpu_custom_call.1} parent=1 // pred_region
      _
    $region5: #{tpu_custom_call.1} parent=1 // pred_fallthru
      _
    // Predicated region
    $region6: #{tpu_custom_call.1} parent=1 // pred_check
      _
    $region7: #{tpu_custom_call.1} parent=1 // pred_check_branch
      %14 = sbr.rel (0) target = $region9
    $region8: #{tpu_custom_call.1} parent=1 // pred_region
      _
    $region9: #{tpu_custom_call.1} parent=1 // pred_fallthru
      _
    // Predicated region
    $region10: #{tpu_custom_call.1} parent=1 // pred_check
      _
    $region11: #{tpu_custom_call.1} parent=1 // pred_check_branch
      %16 = sbr.rel (0) target = $region13
    $region12: #{tpu_custom_call.1} parent=1 // pred_region
      _
    $region13: #{tpu_custom_call.1} parent=1 // pred_fallthru
      _
    // Predicated region
    $region14: #{tpu_custom_call.1} parent=1 // pred_check
      _
    $region15: #{tpu_custom_call.1} parent=1 // pred_check_branch
      %18 = sbr.rel (0) target = $region17
    $region16: #{tpu_custom_call.1} parent=1 // pred_region
      _
    $region17: #{tpu_custom_call.1} parent=1 // pred_fallthru
      _
    // Predicated region
    $region18: #{tpu_custom_call.1} parent=1 // pred_check
      _
    $region19: #{tpu_custom_call.1} parent=1 // pred_check_branch
      %20 = sbr.rel (0) target = $region21
    $region20: #{tpu_custom_call.1} parent=1 // pred_region
      _
    $region21: #{tpu_custom_call.1} parent=1 // pred_fallthru
      _
    %v21 = vld [vmem:[%s0] sm:$0xff]
    %v22 = vld [vmem:[%s0 + $0x8] sm:$0xff]
    %v23 = vld [vmem:[%s0 + $0x10] sm:$0xff]
    %v24 = vld [vmem:[%s0 + $0x18] sm:$0xff]
    %v25 = vld [vmem:[%s0 + $0x20] sm:$0xff]
    %v26 = vld [vmem:[%s0 + $0x28] sm:$0xff]
    %v27 = vld [vmem:[%s0 + $0x30] sm:$0xff]
    %v28 = vld [vmem:[%s0 + $0x38] sm:$0xff]
    %v29 = vld [vmem:[%s0 + $0x40] sm:$0xff]
    %v30 = vld [vmem:[%s0 + $0x48] sm:$0xff]
    %v31 = vld [vmem:[%s0 + $0x50] sm:$0xff]
    %v32 = vld [vmem:[%s0 + $0x58] sm:$0xff]
    %v33 = vld [vmem:[%s0 + $0x60] sm:$0xff]
    %v34 = vld [vmem:[%s0 + $0x68] sm:$0xff]
    %v35 = vld [vmem:[%s0 + $0x70] sm:$0xff]
    %v36 = vld [vmem:[%s0 + $0x78] sm:$0xff]
    %v37 = vld [vmem:[%s0 + $0x80] sm:$0xff]
    %v38 = vld [vmem:[%s0 + $0x88] sm:$0xff]
    %v39 = vld [vmem:[%s0 + $0x90] sm:$0xff]
    %v40 = vld [vmem:[%s0 + $0x98] sm:$0xff]
    %v41 = vld [vmem:[%s0 + $0xa0] sm:$0xff]
    %v42 = vld [vmem:[%s0 + $0xa8] sm:$0xff]
    %v43 = vld [vmem:[%s0 + $0xb0] sm:$0xff]
    %v44 = vld [vmem:[%s0 + $0xb8] sm:$0xff]
    %v45 = vld [vmem:[%s0 + $0xc0] sm:$0xff]
    %v46 = vld [vmem:[%s0 + $0xc8] sm:$0xff]
    %v47 = vld [vmem:[%s0 + $0xd0] sm:$0xff]
    %v48 = vld [vmem:[%s0 + $0xd8] sm:$0xff]
    %v49 = vld [vmem:[%s0 + $0xe0] sm:$0xff]
    %v50 = vld [vmem:[%s0 + $0xe8] sm:$0xff]
    %v51 = vld [vmem:[%s0 + $0xf0] sm:$0xff]
    %v52 = vld [vmem:[%s0 + $0xf8] sm:$0xff]
    %v53 = vld [vmem:[%s4] sm:$0xff]
    %v54 = vld [vmem:[%s1] sm:$0x1]
    %56 = vset.pattern.permute.xlu0 0
    %57 = vperm.xlu0 %56, %v21
    %v58 = vpop.permute.xlu0 %57
    %61 = vset.pattern.permute.xlu0 0
    %62 = vperm.xlu0 %61, %v22
    %v63 = vpop.permute.xlu0 %62
    %66 = vset.pattern.permute.xlu0 0
    %67 = vperm.xlu0 %66, %v23
    %v68 = vpop.permute.xlu0 %67
    %71 = vset.pattern.permute.xlu0 0
    %72 = vperm.xlu0 %71, %v24
    %v73 = vpop.permute.xlu0 %72
    %76 = vset.pattern.permute.xlu0 0
    %77 = vperm.xlu0 %76, %v25
    %v78 = vpop.permute.xlu0 %77
    %81 = vset.pattern.permute.xlu0 0
    %82 = vperm.xlu0 %81, %v26
    %v83 = vpop.permute.xlu0 %82
    %86 = vset.pattern.permute.xlu0 0
    %87 = vperm.xlu0 %86, %v27
    %v88 = vpop.permute.xlu0 %87
    %91 = vset.pattern.permute.xlu0 0
    %92 = vperm.xlu0 %91, %v28
    %v93 = vpop.permute.xlu0 %92
    %96 = vset.pattern.permute.xlu0 0
    %97 = vperm.xlu0 %96, %v29
    %v98 = vpop.permute.xlu0 %97
    %101 = vset.pattern.permute.xlu0 0
    %102 = vperm.xlu0 %101, %v30
    %v103 = vpop.permute.xlu0 %102
    %106 = vset.pattern.permute.xlu0 0
    %107 = vperm.xlu0 %106, %v31
    %v108 = vpop.permute.xlu0 %107
    %111 = vset.pattern.permute.xlu0 0
    %112 = vperm.xlu0 %111, %v32
    %v113 = vpop.permute.xlu0 %112
    %116 = vset.pattern.permute.xlu0 0
    %117 = vperm.xlu0 %116, %v33
    %v118 = vpop.permute.xlu0 %117
    %121 = vset.pattern.permute.xlu0 0
    %122 = vperm.xlu0 %121, %v34
    %v123 = vpop.permute.xlu0 %122
    %126 = vset.pattern.permute.xlu0 0
    %127 = vperm.xlu0 %126, %v35
    %v128 = vpop.permute.xlu0 %127
    %131 = vset.pattern.permute.xlu0 0
    %132 = vperm.xlu0 %131, %v36
    %v133 = vpop.permute.xlu0 %132
    %136 = vset.pattern.permute.xlu0 0
    %137 = vperm.xlu0 %136, %v37
    %v138 = vpop.permute.xlu0 %137
    %141 = vset.pattern.permute.xlu0 0
    %142 = vperm.xlu0 %141, %v38
    %v143 = vpop.permute.xlu0 %142
    %146 = vset.pattern.permute.xlu0 0
    %147 = vperm.xlu0 %146, %v39
    %v148 = vpop.permute.xlu0 %147
    %151 = vset.pattern.permute.xlu0 0
    %152 = vperm.xlu0 %151, %v40
    %v153 = vpop.permute.xlu0 %152
    %156 = vset.pattern.permute.xlu0 0
    %157 = vperm.xlu0 %156, %v41
    %v158 = vpop.permute.xlu0 %157
    %161 = vset.pattern.permute.xlu0 0
    %162 = vperm.xlu0 %161, %v42
    %v163 = vpop.permute.xlu0 %162
    %166 = vset.pattern.permute.xlu0 0
    %167 = vperm.xlu0 %166, %v43
    %v168 = vpop.permute.xlu0 %167
    %171 = vset.pattern.permute.xlu0 0
    %172 = vperm.xlu0 %171, %v44
    %v173 = vpop.permute.xlu0 %172
    %176 = vset.pattern.permute.xlu0 0
    %177 = vperm.xlu0 %176, %v45
    %v178 = vpop.permute.xlu0 %177
    %181 = vset.pattern.permute.xlu0 0
    %182 = vperm.xlu0 %181, %v46
    %v183 = vpop.permute.xlu0 %182
    %186 = vset.pattern.permute.xlu0 0
    %187 = vperm.xlu0 %186, %v47
    %v188 = vpop.permute.xlu0 %187
    %191 = vset.pattern.permute.xlu0 0
    %192 = vperm.xlu0 %191, %v48
    %v193 = vpop.permute.xlu0 %192
    %196 = vset.pattern.permute.xlu0 0
    %197 = vperm.xlu0 %196, %v49
    %v198 = vpop.permute.xlu0 %197
    %201 = vset.pattern.permute.xlu0 0
    %202 = vperm.xlu0 %201, %v50
    %v203 = vpop.permute.xlu0 %202
    %206 = vset.pattern.permute.xlu0 0
    %207 = vperm.xlu0 %206, %v51
    %v208 = vpop.permute.xlu0 %207
    %211 = vset.pattern.permute.xlu0 0
    %212 = vperm.xlu0 %211, %v52
    %v213 = vpop.permute.xlu0 %212
    %v215 = vlaneseq
    %v216 = vshrl.u32 %v215, 7
    %v217 = vsub.s32 0, %v216
    %v218 = vrot.slane %v54, %v217
    %v219 = vmul.f32 %v58, %v218
    %v220 = vmul.f32 %v63, %v218
    %v221 = vmul.f32 %v68, %v218
    %v222 = vmul.f32 %v73, %v218
    %v223 = vmul.f32 %v78, %v218
    %v224 = vmul.f32 %v83, %v218
    %v225 = vmul.f32 %v88, %v218
    %v226 = vmul.f32 %v93, %v218
    %v227 = vmul.f32 %v98, %v218
    %v228 = vmul.f32 %v103, %v218
    %v229 = vmul.f32 %v108, %v218
    %v230 = vmul.f32 %v113, %v218
    %v231 = vmul.f32 %v118, %v218
    %v232 = vmul.f32 %v123, %v218
    %v233 = vmul.f32 %v128, %v218
    %v234 = vmul.f32 %v133, %v218
    %v235 = vmul.f32 %v138, %v218
    %v236 = vmul.f32 %v143, %v218
    %v237 = vmul.f32 %v148, %v218
    %v238 = vmul.f32 %v153, %v218
    %v239 = vmul.f32 %v158, %v218
    %v240 = vmul.f32 %v163, %v218
    %v241 = vmul.f32 %v168, %v218
    %v242 = vmul.f32 %v173, %v218
    %v243 = vmul.f32 %v178, %v218
    %v244 = vmul.f32 %v183, %v218
    %v245 = vmul.f32 %v188, %v218
    %v246 = vmul.f32 %v193, %v218
    %v247 = vmul.f32 %v198, %v218
    %v248 = vmul.f32 %v203, %v218
    %v249 = vmul.f32 %v208, %v218
    %v250 = vmul.f32 %v213, %v218
    %v251 = vlaneseq
    %v252 = vshrl.u32 %v251, 7
    %v253 = vsub.s32 0, %v252
    %v254 = vrot.slane %v53, %v253
    %v255 = vadd.f32 %v254, %v219
    %v256 = vadd.f32 %v254, %v220
    %v257 = vadd.f32 %v254, %v221
    %v258 = vadd.f32 %v254, %v222
    %v259 = vadd.f32 %v254, %v223
    %v260 = vadd.f32 %v254, %v224
    %v261 = vadd.f32 %v254, %v225
    %v262 = vadd.f32 %v254, %v226
    %v263 = vadd.f32 %v254, %v227
    %v264 = vadd.f32 %v254, %v228
    %v265 = vadd.f32 %v254, %v229
    %v266 = vadd.f32 %v254, %v230
    %v267 = vadd.f32 %v254, %v231
    %v268 = vadd.f32 %v254, %v232
    %v269 = vadd.f32 %v254, %v233
    %v270 = vadd.f32 %v254, %v234
    %v271 = vadd.f32 %v254, %v235
    %v272 = vadd.f32 %v254, %v236
    %v273 = vadd.f32 %v254, %v237
    %v274 = vadd.f32 %v254, %v238
    %v275 = vadd.f32 %v254, %v239
    %v276 = vadd.f32 %v254, %v240
    %v277 = vadd.f32 %v254, %v241
    %v278 = vadd.f32 %v254, %v242
    %v279 = vadd.f32 %v254, %v243
    %v280 = vadd.f32 %v254, %v244
    %v281 = vadd.f32 %v254, %v245
    %v282 = vadd.f32 %v254, %v246
    %v283 = vadd.f32 %v254, %v247
    %v284 = vadd.f32 %v254, %v248
    %v285 = vadd.f32 %v254, %v249
    %v286 = vadd.f32 %v254, %v250
    %v287 = vld [vmem:[%s1 + $0x1] sm:$0x1]
    %288 = vset.pattern.permute.xlu0 1
    %289 = vperm.xlu0 %288, %v21
    %v290 = vpop.permute.xlu0 %289
    %292 = vset.pattern.permute.xlu0 1
    %293 = vperm.xlu0 %292, %v22
    %v294 = vpop.permute.xlu0 %293
    %296 = vset.pattern.permute.xlu0 1
    %297 = vperm.xlu0 %296, %v23
    %v298 = vpop.permute.xlu0 %297
    %300 = vset.pattern.permute.xlu0 1
    %301 = vperm.xlu0 %300, %v24
    %v302 = vpop.permute.xlu0 %301
    %304 = vset.pattern.permute.xlu0 1
    %305 = vperm.xlu0 %304, %v25
    %v306 = vpop.permute.xlu0 %305
    %308 = vset.pattern.permute.xlu0 1
    %309 = vperm.xlu0 %308, %v26
    %v310 = vpop.permute.xlu0 %309
    %312 = vset.pattern.permute.xlu0 1
    %313 = vperm.xlu0 %312, %v27
    %v314 = vpop.permute.xlu0 %313
    %316 = vset.pattern.permute.xlu0 1
    %317 = vperm.xlu0 %316, %v28
    %v318 = vpop.permute.xlu0 %317
    %320 = vset.pattern.permute.xlu0 1
    %321 = vperm.xlu0 %320, %v29
    %v322 = vpop.permute.xlu0 %321
    %324 = vset.pattern.permute.xlu0 1
    %325 = vperm.xlu0 %324, %v30
    %v326 = vpop.permute.xlu0 %325
    %328 = vset.pattern.permute.xlu0 1
    %329 = vperm.xlu0 %328, %v31
    %v330 = vpop.permute.xlu0 %329
    %332 = vset.pattern.permute.xlu0 1
    %333 = vperm.xlu0 %332, %v32
    %v334 = vpop.permute.xlu0 %333
    %336 = vset.pattern.permute.xlu0 1
    %337 = vperm.xlu0 %336, %v33
    %v338 = vpop.permute.xlu0 %337
    %340 = vset.pattern.permute.xlu0 1
    %341 = vperm.xlu0 %340, %v34
    %v342 = vpop.permute.xlu0 %341
    %344 = vset.pattern.permute.xlu0 1
    %345 = vperm.xlu0 %344, %v35
    %v346 = vpop.permute.xlu0 %345
    %348 = vset.pattern.permute.xlu0 1
    %349 = vperm.xlu0 %348, %v36
    %v350 = vpop.permute.xlu0 %349
    %352 = vset.pattern.permute.xlu0 1
    %353 = vperm.xlu0 %352, %v37
    %v354 = vpop.permute.xlu0 %353
    %356 = vset.pattern.permute.xlu0 1
    %357 = vperm.xlu0 %356, %v38
    %v358 = vpop.permute.xlu0 %357
    %360 = vset.pattern.permute.xlu0 1
    %361 = vperm.xlu0 %360, %v39
    %v362 = vpop.permute.xlu0 %361
    %364 = vset.pattern.permute.xlu0 1
    %365 = vperm.xlu0 %364, %v40
    %v366 = vpop.permute.xlu0 %365
    %368 = vset.pattern.permute.xlu0 1
    %369 = vperm.xlu0 %368, %v41
    %v370 = vpop.permute.xlu0 %369
    %372 = vset.pattern.permute.xlu0 1
    %373 = vperm.xlu0 %372, %v42
    %v374 = vpop.permute.xlu0 %373
    %376 = vset.pattern.permute.xlu0 1
    %377 = vperm.xlu0 %376, %v43
    %v378 = vpop.permute.xlu0 %377
    %380 = vset.pattern.permute.xlu0 1
    %381 = vperm.xlu0 %380, %v44
    %v382 = vpop.permute.xlu0 %381
    %384 = vset.pattern.permute.xlu0 1
    %385 = vperm.xlu0 %384, %v45
    %v386 = vpop.permute.xlu0 %385
    %388 = vset.pattern.permute.xlu0 1
    %389 = vperm.xlu0 %388, %v46
    %v390 = vpop.permute.xlu0 %389
    %392 = vset.pattern.permute.xlu0 1
    %393 = vperm.xlu0 %392, %v47
    %v394 = vpop.permute.xlu0 %393
    %396 = vset.pattern.permute.xlu0 1
    %397 = vperm.xlu0 %396, %v48
    %v398 = vpop.permute.xlu0 %397
    %400 = vset.pattern.permute.xlu0 1
    %401 = vperm.xlu0 %400, %v49
    %v402 = vpop.permute.xlu0 %401
    %404 = vset.pattern.permute.xlu0 1
    %405 = vperm.xlu0 %404, %v50
    %v406 = vpop.permute.xlu0 %405
    %408 = vset.pattern.permute.xlu0 1
    %409 = vperm.xlu0 %408, %v51
    %v410 = vpop.permute.xlu0 %409
    %412 = vset.pattern.permute.xlu0 1
    %413 = vperm.xlu0 %412, %v52
    %v414 = vpop.permute.xlu0 %413
    %v416 = vlaneseq
    %v417 = vshrl.u32 %v416, 7
    %v418 = vsub.s32 0, %v417
    %v419 = vrot.slane %v287, %v418
    %v420 = vmul.f32 %v290, %v419
    %v421 = vmul.f32 %v294, %v419
    %v422 = vmul.f32 %v298, %v419
    %v423 = vmul.f32 %v302, %v419
    %v424 = vmul.f32 %v306, %v419
    %v425 = vmul.f32 %v310, %v419
    %v426 = vmul.f32 %v314, %v419
    %v427 = vmul.f32 %v318, %v419
    %v428 = vmul.f32 %v322, %v419
    %v429 = vmul.f32 %v326, %v419
    %v430 = vmul.f32 %v330, %v419
    %v431 = vmul.f32 %v334, %v419
    %v432 = vmul.f32 %v338, %v419
    %v433 = vmul.f32 %v342, %v419
    %v434 = vmul.f32 %v346, %v419
    %v435 = vmul.f32 %v350, %v419
    %v436 = vmul.f32 %v354, %v419
    %v437 = vmul.f32 %v358, %v419
    %v438 = vmul.f32 %v362, %v419
    %v439 = vmul.f32 %v366, %v419
    %v440 = vmul.f32 %v370, %v419
    %v441 = vmul.f32 %v374, %v419
    %v442 = vmul.f32 %v378, %v419
    %v443 = vmul.f32 %v382, %v419
    %v444 = vmul.f32 %v386, %v419
    %v445 = vmul.f32 %v390, %v419
    %v446 = vmul.f32 %v394, %v419
    %v447 = vmul.f32 %v398, %v419
    %v448 = vmul.f32 %v402, %v419
    %v449 = vmul.f32 %v406, %v419
    %v450 = vmul.f32 %v410, %v419
    %v451 = vmul.f32 %v414, %v419
    %v452 = vadd.f32 %v255, %v420
    %v453 = vadd.f32 %v256, %v421
    %v454 = vadd.f32 %v257, %v422
    %v455 = vadd.f32 %v258, %v423
    %v456 = vadd.f32 %v259, %v424
    %v457 = vadd.f32 %v260, %v425
    %v458 = vadd.f32 %v261, %v426
    %v459 = vadd.f32 %v262, %v427
    %v460 = vadd.f32 %v263, %v428
    %v461 = vadd.f32 %v264, %v429
    %v462 = vadd.f32 %v265, %v430
    %v463 = vadd.f32 %v266, %v431
    %v464 = vadd.f32 %v267, %v432
    %v465 = vadd.f32 %v268, %v433
    %v466 = vadd.f32 %v269, %v434
    %v467 = vadd.f32 %v270, %v435
    %v468 = vadd.f32 %v271, %v436
    %v469 = vadd.f32 %v272, %v437
    %v470 = vadd.f32 %v273, %v438
    %v471 = vadd.f32 %v274, %v439
    %v472 = vadd.f32 %v275, %v440
    %v473 = vadd.f32 %v276, %v441
    %v474 = vadd.f32 %v277, %v442
    %v475 = vadd.f32 %v278, %v443
    %v476 = vadd.f32 %v279, %v444
    %v477 = vadd.f32 %v280, %v445
    %v478 = vadd.f32 %v281, %v446
    %v479 = vadd.f32 %v282, %v447
    %v480 = vadd.f32 %v283, %v448
    %v481 = vadd.f32 %v284, %v449
    %v482 = vadd.f32 %v285, %v450
    %v483 = vadd.f32 %v286, %v451
    %484 = vadd.xlane.f32.xlu0 %v452
    %v485 = vpop.xlane.xlu0 %484
    %486 = vadd.xlane.f32.xlu0 %v453
    %v487 = vpop.xlane.xlu0 %486
    %488 = vadd.xlane.f32.xlu0 %v454
    %v489 = vpop.xlane.xlu0 %488
    %490 = vadd.xlane.f32.xlu0 %v455
    %v491 = vpop.xlane.xlu0 %490
    %492 = vadd.xlane.f32.xlu0 %v456
    %v493 = vpop.xlane.xlu0 %492
    %494 = vadd.xlane.f32.xlu0 %v457
    %v495 = vpop.xlane.xlu0 %494
    %496 = vadd.xlane.f32.xlu0 %v458
    %v497 = vpop.xlane.xlu0 %496
    %498 = vadd.xlane.f32.xlu0 %v459
    %v499 = vpop.xlane.xlu0 %498
    %500 = vadd.xlane.f32.xlu0 %v460
    %v501 = vpop.xlane.xlu0 %500
    %502 = vadd.xlane.f32.xlu0 %v461
    %v503 = vpop.xlane.xlu0 %502
    %504 = vadd.xlane.f32.xlu0 %v462
    %v505 = vpop.xlane.xlu0 %504
    %506 = vadd.xlane.f32.xlu0 %v463
    %v507 = vpop.xlane.xlu0 %506
    %508 = vadd.xlane.f32.xlu0 %v464
    %v509 = vpop.xlane.xlu0 %508
    %510 = vadd.xlane.f32.xlu0 %v465
    %v511 = vpop.xlane.xlu0 %510
    %512 = vadd.xlane.f32.xlu0 %v466
    %v513 = vpop.xlane.xlu0 %512
    %514 = vadd.xlane.f32.xlu0 %v467
    %v515 = vpop.xlane.xlu0 %514
    %516 = vadd.xlane.f32.xlu0 %v468
    %v517 = vpop.xlane.xlu0 %516
    %518 = vadd.xlane.f32.xlu0 %v469
    %v519 = vpop.xlane.xlu0 %518
    %520 = vadd.xlane.f32.xlu0 %v470
    %v521 = vpop.xlane.xlu0 %520
    %522 = vadd.xlane.f32.xlu0 %v471
    %v523 = vpop.xlane.xlu0 %522
    %524 = vadd.xlane.f32.xlu0 %v472
    %v525 = vpop.xlane.xlu0 %524
    %526 = vadd.xlane.f32.xlu0 %v473
    %v527 = vpop.xlane.xlu0 %526
    %528 = vadd.xlane.f32.xlu0 %v474
    %v529 = vpop.xlane.xlu0 %528
    %530 = vadd.xlane.f32.xlu0 %v475
    %v531 = vpop.xlane.xlu0 %530
    %532 = vadd.xlane.f32.xlu0 %v476
    %v533 = vpop.xlane.xlu0 %532
    %534 = vadd.xlane.f32.xlu0 %v477
    %v535 = vpop.xlane.xlu0 %534
    %536 = vadd.xlane.f32.xlu0 %v478
    %v537 = vpop.xlane.xlu0 %536
    %538 = vadd.xlane.f32.xlu0 %v479
    %v539 = vpop.xlane.xlu0 %538
    %540 = vadd.xlane.f32.xlu0 %v480
    %v541 = vpop.xlane.xlu0 %540
    %542 = vadd.xlane.f32.xlu0 %v481
    %v543 = vpop.xlane.xlu0 %542
    %544 = vadd.xlane.f32.xlu0 %v482
    %v545 = vpop.xlane.xlu0 %544
    %546 = vadd.xlane.f32.xlu0 %v483
    %v547 = vpop.xlane.xlu0 %546
    %v548 = vmul.f32 %v485, 0.03125
    %v549 = vmul.f32 %v487, 0.03125
    %v550 = vmul.f32 %v489, 0.03125
    %v551 = vmul.f32 %v491, 0.03125
    %v552 = vmul.f32 %v493, 0.03125
    %v553 = vmul.f32 %v495, 0.03125
    %v554 = vmul.f32 %v497, 0.03125
    %v555 = vmul.f32 %v499, 0.03125
    %v556 = vmul.f32 %v501, 0.03125
    %v557 = vmul.f32 %v503, 0.03125
    %v558 = vmul.f32 %v505, 0.03125
    %v559 = vmul.f32 %v507, 0.03125
    %v560 = vmul.f32 %v509, 0.03125
    %v561 = vmul.f32 %v511, 0.03125
    %v562 = vmul.f32 %v513, 0.03125
    %v563 = vmul.f32 %v515, 0.03125
    %v564 = vmul.f32 %v517, 0.03125
    %v565 = vmul.f32 %v519, 0.03125
    %v566 = vmul.f32 %v521, 0.03125
    %v567 = vmul.f32 %v523, 0.03125
    %v568 = vmul.f32 %v525, 0.03125
    %v569 = vmul.f32 %v527, 0.03125
    %v570 = vmul.f32 %v529, 0.03125
    %v571 = vmul.f32 %v531, 0.03125
    %v572 = vmul.f32 %v533, 0.03125
    %v573 = vmul.f32 %v535, 0.03125
    %v574 = vmul.f32 %v537, 0.03125
    %v575 = vmul.f32 %v539, 0.03125
    %v576 = vmul.f32 %v541, 0.03125
    %v577 = vmul.f32 %v543, 0.03125
    %v578 = vmul.f32 %v545, 0.03125
    %v579 = vmul.f32 %v547, 0.03125
    %v580 = vmul.f32 %v452, %v452
    %v581 = vmul.f32 %v453, %v453
    %v582 = vmul.f32 %v454, %v454
    %v583 = vmul.f32 %v455, %v455
    %v584 = vmul.f32 %v456, %v456
    %v585 = vmul.f32 %v457, %v457
    %v586 = vmul.f32 %v458, %v458
    %v587 = vmul.f32 %v459, %v459
    %v588 = vmul.f32 %v460, %v460
    %v589 = vmul.f32 %v461, %v461
    %v590 = vmul.f32 %v462, %v462
    %v591 = vmul.f32 %v463, %v463
    %v592 = vmul.f32 %v464, %v464
    %v593 = vmul.f32 %v465, %v465
    %v594 = vmul.f32 %v466, %v466
    %v595 = vmul.f32 %v467, %v467
    %v596 = vmul.f32 %v468, %v468
    %v597 = vmul.f32 %v469, %v469
    %v598 = vmul.f32 %v470, %v470
    %v599 = vmul.f32 %v471, %v471
    %v600 = vmul.f32 %v472, %v472
    %v601 = vmul.f32 %v473, %v473
    %v602 = vmul.f32 %v474, %v474
    %v603 = vmul.f32 %v475, %v475
    %v604 = vmul.f32 %v476, %v476
    %v605 = vmul.f32 %v477, %v477
    %v606 = vmul.f32 %v478, %v478
    %v607 = vmul.f32 %v479, %v479
    %v608 = vmul.f32 %v480, %v480
    %v609 = vmul.f32 %v481, %v481
    %v610 = vmul.f32 %v482, %v482
    %v611 = vmul.f32 %v483, %v483
    %612 = vadd.xlane.f32.xlu0 %v580
    %v613 = vpop.xlane.xlu0 %612
    %614 = vadd.xlane.f32.xlu0 %v581
    %v615 = vpop.xlane.xlu0 %614
    %616 = vadd.xlane.f32.xlu0 %v582
    %v617 = vpop.xlane.xlu0 %616
    %618 = vadd.xlane.f32.xlu0 %v583
    %v619 = vpop.xlane.xlu0 %618
    %620 = vadd.xlane.f32.xlu0 %v584
    %v621 = vpop.xlane.xlu0 %620
    %622 = vadd.xlane.f32.xlu0 %v585
    %v623 = vpop.xlane.xlu0 %622
    %624 = vadd.xlane.f32.xlu0 %v586
    %v625 = vpop.xlane.xlu0 %624
    %626 = vadd.xlane.f32.xlu0 %v587
    %v627 = vpop.xlane.xlu0 %626
    %628 = vadd.xlane.f32.xlu0 %v588
    %v629 = vpop.xlane.xlu0 %628
    %630 = vadd.xlane.f32.xlu0 %v589
    %v631 = vpop.xlane.xlu0 %630
    %632 = vadd.xlane.f32.xlu0 %v590
    %v633 = vpop.xlane.xlu0 %632
    %634 = vadd.xlane.f32.xlu0 %v591
    %v635 = vpop.xlane.xlu0 %634
    %636 = vadd.xlane.f32.xlu0 %v592
    %v637 = vpop.xlane.xlu0 %636
    %638 = vadd.xlane.f32.xlu0 %v593
    %v639 = vpop.xlane.xlu0 %638
    %640 = vadd.xlane.f32.xlu0 %v594
    %v641 = vpop.xlane.xlu0 %640
    %642 = vadd.xlane.f32.xlu0 %v595
    %v643 = vpop.xlane.xlu0 %642
    %644 = vadd.xlane.f32.xlu0 %v596
    %v645 = vpop.xlane.xlu0 %644
    %646 = vadd.xlane.f32.xlu0 %v597
    %v647 = vpop.xlane.xlu0 %646
    %648 = vadd.xlane.f32.xlu0 %v598
    %v649 = vpop.xlane.xlu0 %648
    %650 = vadd.xlane.f32.xlu0 %v599
    %v651 = vpop.xlane.xlu0 %650
    %652 = vadd.xlane.f32.xlu0 %v600
    %v653 = vpop.xlane.xlu0 %652
    %654 = vadd.xlane.f32.xlu0 %v601
    %v655 = vpop.xlane.xlu0 %654
    %656 = vadd.xlane.f32.xlu0 %v602
    %v657 = vpop.xlane.xlu0 %656
    %658 = vadd.xlane.f32.xlu0 %v603
    %v659 = vpop.xlane.xlu0 %658
    %660 = vadd.xlane.f32.xlu0 %v604
    %v661 = vpop.xlane.xlu0 %660
    %662 = vadd.xlane.f32.xlu0 %v605
    %v663 = vpop.xlane.xlu0 %662
    %664 = vadd.xlane.f32.xlu0 %v606
    %v665 = vpop.xlane.xlu0 %664
    %666 = vadd.xlane.f32.xlu0 %v607
    %v667 = vpop.xlane.xlu0 %666
    %668 = vadd.xlane.f32.xlu0 %v608
    %v669 = vpop.xlane.xlu0 %668
    %670 = vadd.xlane.f32.xlu0 %v609
    %v671 = vpop.xlane.xlu0 %670
    %672 = vadd.xlane.f32.xlu0 %v610
    %v673 = vpop.xlane.xlu0 %672
    %674 = vadd.xlane.f32.xlu0 %v611
    %v675 = vpop.xlane.xlu0 %674
    %v676 = vmul.f32 %v613, 0.03125
    %v677 = vmul.f32 %v615, 0.03125
    %v678 = vmul.f32 %v617, 0.03125
    %v679 = vmul.f32 %v619, 0.03125
    %v680 = vmul.f32 %v621, 0.03125
    %v681 = vmul.f32 %v623, 0.03125
    %v682 = vmul.f32 %v625, 0.03125
    %v683 = vmul.f32 %v627, 0.03125
    %v684 = vmul.f32 %v629, 0.03125
    %v685 = vmul.f32 %v631, 0.03125
    %v686 = vmul.f32 %v633, 0.03125
    %v687 = vmul.f32 %v635, 0.03125
    %v688 = vmul.f32 %v637, 0.03125
    %v689 = vmul.f32 %v639, 0.03125
    %v690 = vmul.f32 %v641, 0.03125
    %v691 = vmul.f32 %v643, 0.03125
    %v692 = vmul.f32 %v645, 0.03125
    %v693 = vmul.f32 %v647, 0.03125
    %v694 = vmul.f32 %v649, 0.03125
    %v695 = vmul.f32 %v651, 0.03125
    %v696 = vmul.f32 %v653, 0.03125
    %v697 = vmul.f32 %v655, 0.03125
    %v698 = vmul.f32 %v657, 0.03125
    %v699 = vmul.f32 %v659, 0.03125
    %v700 = vmul.f32 %v661, 0.03125
    %v701 = vmul.f32 %v663, 0.03125
    %v702 = vmul.f32 %v665, 0.03125
    %v703 = vmul.f32 %v667, 0.03125
    %v704 = vmul.f32 %v669, 0.03125
    %v705 = vmul.f32 %v671, 0.03125
    %v706 = vmul.f32 %v673, 0.03125
    %v707 = vmul.f32 %v675, 0.03125
    %v708 = vmul.f32 %v548, %v548
    %v709 = vmul.f32 %v549, %v549
    %v710 = vmul.f32 %v550, %v550
    %v711 = vmul.f32 %v551, %v551
    %v712 = vmul.f32 %v552, %v552
    %v713 = vmul.f32 %v553, %v553
    %v714 = vmul.f32 %v554, %v554
    %v715 = vmul.f32 %v555, %v555
    %v716 = vmul.f32 %v556, %v556
    %v717 = vmul.f32 %v557, %v557
    %v718 = vmul.f32 %v558, %v558
    %v719 = vmul.f32 %v559, %v559
    %v720 = vmul.f32 %v560, %v560
    %v721 = vmul.f32 %v561, %v561
    %v722 = vmul.f32 %v562, %v562
    %v723 = vmul.f32 %v563, %v563
    %v724 = vmul.f32 %v564, %v564
    %v725 = vmul.f32 %v565, %v565
    %v726 = vmul.f32 %v566, %v566
    %v727 = vmul.f32 %v567, %v567
    %v728 = vmul.f32 %v568, %v568
    %v729 = vmul.f32 %v569, %v569
    %v730 = vmul.f32 %v570, %v570
    %v731 = vmul.f32 %v571, %v571
    %v732 = vmul.f32 %v572, %v572
    %v733 = vmul.f32 %v573, %v573
    %v734 = vmul.f32 %v574, %v574
    %v735 = vmul.f32 %v575, %v575
    %v736 = vmul.f32 %v576, %v576
    %v737 = vmul.f32 %v577, %v577
    %v738 = vmul.f32 %v578, %v578
    %v739 = vmul.f32 %v579, %v579
    %v740 = vsub.f32 %v676, %v708
    %v741 = vsub.f32 %v677, %v709
    %v742 = vsub.f32 %v678, %v710
    %v743 = vsub.f32 %v679, %v711
    %v744 = vsub.f32 %v680, %v712
    %v745 = vsub.f32 %v681, %v713
    %v746 = vsub.f32 %v682, %v714
    %v747 = vsub.f32 %v683, %v715
    %v748 = vsub.f32 %v684, %v716
    %v749 = vsub.f32 %v685, %v717
    %v750 = vsub.f32 %v686, %v718
    %v751 = vsub.f32 %v687, %v719
    %v752 = vsub.f32 %v688, %v720
    %v753 = vsub.f32 %v689, %v721
    %v754 = vsub.f32 %v690, %v722
    %v755 = vsub.f32 %v691, %v723
    %v756 = vsub.f32 %v692, %v724
    %v757 = vsub.f32 %v693, %v725
    %v758 = vsub.f32 %v694, %v726
    %v759 = vsub.f32 %v695, %v727
    %v760 = vsub.f32 %v696, %v728
    %v761 = vsub.f32 %v697, %v729
    %v762 = vsub.f32 %v698, %v730
    %v763 = vsub.f32 %v699, %v731
    %v764 = vsub.f32 %v700, %v732
    %v765 = vsub.f32 %v701, %v733
    %v766 = vsub.f32 %v702, %v734
    %v767 = vsub.f32 %v703, %v735
    %v768 = vsub.f32 %v704, %v736
    %v769 = vsub.f32 %v705, %v737
    %v770 = vsub.f32 %v706, %v738
    %v771 = vsub.f32 %v707, %v739
    %v772 = vsub.f32 %v452, %v548
    %v773 = vsub.f32 %v453, %v549
    %v774 = vsub.f32 %v454, %v550
    %v775 = vsub.f32 %v455, %v551
    %v776 = vsub.f32 %v456, %v552
    %v777 = vsub.f32 %v457, %v553
    %v778 = vsub.f32 %v458, %v554
    %v779 = vsub.f32 %v459, %v555
    %v780 = vsub.f32 %v460, %v556
    %v781 = vsub.f32 %v461, %v557
    %v782 = vsub.f32 %v462, %v558
    %v783 = vsub.f32 %v463, %v559
    %v784 = vsub.f32 %v464, %v560
    %v785 = vsub.f32 %v465, %v561
    %v786 = vsub.f32 %v466, %v562
    %v787 = vsub.f32 %v467, %v563
    %v788 = vsub.f32 %v468, %v564
    %v789 = vsub.f32 %v469, %v565
    %v790 = vsub.f32 %v470, %v566
    %v791 = vsub.f32 %v471, %v567
    %v792 = vsub.f32 %v472, %v568
    %v793 = vsub.f32 %v473, %v569
    %v794 = vsub.f32 %v474, %v570
    %v795 = vsub.f32 %v475, %v571
    %v796 = vsub.f32 %v476, %v572
    %v797 = vsub.f32 %v477, %v573
    %v798 = vsub.f32 %v478, %v574
    %v799 = vsub.f32 %v479, %v575
    %v800 = vsub.f32 %v480, %v576
    %v801 = vsub.f32 %v481, %v577
    %v802 = vsub.f32 %v482, %v578
    %v803 = vsub.f32 %v483, %v579
    %v804 = vadd.f32 %v740, 1e-05
    %v805 = vadd.f32 %v741, 1e-05
    %v806 = vadd.f32 %v742, 1e-05
    %v807 = vadd.f32 %v743, 1e-05
    %v808 = vadd.f32 %v744, 1e-05
    %v809 = vadd.f32 %v745, 1e-05
    %v810 = vadd.f32 %v746, 1e-05
    %v811 = vadd.f32 %v747, 1e-05
    %v812 = vadd.f32 %v748, 1e-05
    %v813 = vadd.f32 %v749, 1e-05
    %v814 = vadd.f32 %v750, 1e-05
    %v815 = vadd.f32 %v751, 1e-05
    %v816 = vadd.f32 %v752, 1e-05
    %v817 = vadd.f32 %v753, 1e-05
    %v818 = vadd.f32 %v754, 1e-05
    %v819 = vadd.f32 %v755, 1e-05
    %v820 = vadd.f32 %v756, 1e-05
    %v821 = vadd.f32 %v757, 1e-05
    %v822 = vadd.f32 %v758, 1e-05
    %v823 = vadd.f32 %v759, 1e-05
    %v824 = vadd.f32 %v760, 1e-05
    %v825 = vadd.f32 %v761, 1e-05
    %v826 = vadd.f32 %v762, 1e-05
    %v827 = vadd.f32 %v763, 1e-05
    %v828 = vadd.f32 %v764, 1e-05
    %v829 = vadd.f32 %v765, 1e-05
    %v830 = vadd.f32 %v766, 1e-05
    %v831 = vadd.f32 %v767, 1e-05
    %v832 = vadd.f32 %v768, 1e-05
    %v833 = vadd.f32 %v769, 1e-05
    %v834 = vadd.f32 %v770, 1e-05
    %v835 = vadd.f32 %v771, 1e-05
    %v836 = vrsqrt.pop %v804
    %v837 = vrsqrt.pop %v805
    %v838 = vrsqrt.pop %v806
    %v839 = vrsqrt.pop %v807
    %v840 = vrsqrt.pop %v808
    %v841 = vrsqrt.pop %v809
    %v842 = vrsqrt.pop %v810
    %v843 = vrsqrt.pop %v811
    %v844 = vrsqrt.pop %v812
    %v845 = vrsqrt.pop %v813
    %v846 = vrsqrt.pop %v814
    %v847 = vrsqrt.pop %v815
    %v848 = vrsqrt.pop %v816
    %v849 = vrsqrt.pop %v817
    %v850 = vrsqrt.pop %v818
    %v851 = vrsqrt.pop %v819
    %v852 = vrsqrt.pop %v820
    %v853 = vrsqrt.pop %v821
    %v854 = vrsqrt.pop %v822
    %v855 = vrsqrt.pop %v823
    %v856 = vrsqrt.pop %v824
    %v857 = vrsqrt.pop %v825
    %v858 = vrsqrt.pop %v826
    %v859 = vrsqrt.pop %v827
    %v860 = vrsqrt.pop %v828
    %v861 = vrsqrt.pop %v829
    %v862 = vrsqrt.pop %v830
    %v863 = vrsqrt.pop %v831
    %v864 = vrsqrt.pop %v832
    %v865 = vrsqrt.pop %v833
    %v866 = vrsqrt.pop %v834
    %v867 = vrsqrt.pop %v835
    %v868 = vmul.f32 %v772, %v836
    %v869 = vmul.f32 %v773, %v837
    %v870 = vmul.f32 %v774, %v838
    %v871 = vmul.f32 %v775, %v839
    %v872 = vmul.f32 %v776, %v840
    %v873 = vmul.f32 %v777, %v841
    %v874 = vmul.f32 %v778, %v842
    %v875 = vmul.f32 %v779, %v843
    %v876 = vmul.f32 %v780, %v844
    %v877 = vmul.f32 %v781, %v845
    %v878 = vmul.f32 %v782, %v846
    %v879 = vmul.f32 %v783, %v847
    %v880 = vmul.f32 %v784, %v848
    %v881 = vmul.f32 %v785, %v849
    %v882 = vmul.f32 %v786, %v850
    %v883 = vmul.f32 %v787, %v851
    %v884 = vmul.f32 %v788, %v852
    %v885 = vmul.f32 %v789, %v853
    %v886 = vmul.f32 %v790, %v854
    %v887 = vmul.f32 %v791, %v855
    %v888 = vmul.f32 %v792, %v856
    %v889 = vmul.f32 %v793, %v857
    %v890 = vmul.f32 %v794, %v858
    %v891 = vmul.f32 %v795, %v859
    %v892 = vmul.f32 %v796, %v860
    %v893 = vmul.f32 %v797, %v861
    %v894 = vmul.f32 %v798, %v862
    %v895 = vmul.f32 %v799, %v863
    %v896 = vmul.f32 %v800, %v864
    %v897 = vmul.f32 %v801, %v865
    %v898 = vmul.f32 %v802, %v866
    %v899 = vmul.f32 %v803, %v867
    %v900 = vlaneseq
    %v901 = vshrl.u32 %v900, 7
    %v902 = vsub.s32 1, %v901
    %v903 = vrot.slane %v53, %v902
    %v904 = vmul.f32 %v868, %v903
    %v905 = vmul.f32 %v869, %v903
    %v906 = vmul.f32 %v870, %v903
    %v907 = vmul.f32 %v871, %v903
    %v908 = vmul.f32 %v872, %v903
    %v909 = vmul.f32 %v873, %v903
    %v910 = vmul.f32 %v874, %v903
    %v911 = vmul.f32 %v875, %v903
    %v912 = vmul.f32 %v876, %v903
    %v913 = vmul.f32 %v877, %v903
    %v914 = vmul.f32 %v878, %v903
    %v915 = vmul.f32 %v879, %v903
    %v916 = vmul.f32 %v880, %v903
    %v917 = vmul.f32 %v881, %v903
    %v918 = vmul.f32 %v882, %v903
    %v919 = vmul.f32 %v883, %v903
    %v920 = vmul.f32 %v884, %v903
    %v921 = vmul.f32 %v885, %v903
    %v922 = vmul.f32 %v886, %v903
    %v923 = vmul.f32 %v887, %v903
    %v924 = vmul.f32 %v888, %v903
    %v925 = vmul.f32 %v889, %v903
    %v926 = vmul.f32 %v890, %v903
    %v927 = vmul.f32 %v891, %v903
    %v928 = vmul.f32 %v892, %v903
    %v929 = vmul.f32 %v893, %v903
    %v930 = vmul.f32 %v894, %v903
    %v931 = vmul.f32 %v895, %v903
    %v932 = vmul.f32 %v896, %v903
    %v933 = vmul.f32 %v897, %v903
    %v934 = vmul.f32 %v898, %v903
    %v935 = vmul.f32 %v899, %v903
    %v936 = vlaneseq
    %v937 = vshrl.u32 %v936, 7
    %v938 = vsub.s32 2, %v937
    %v939 = vrot.slane %v53, %v938
    %v940 = vadd.f32 %v904, %v939
    %v941 = vadd.f32 %v905, %v939
    %v942 = vadd.f32 %v906, %v939
    %v943 = vadd.f32 %v907, %v939
    %v944 = vadd.f32 %v908, %v939
    %v945 = vadd.f32 %v909, %v939
    %v946 = vadd.f32 %v910, %v939
    %v947 = vadd.f32 %v911, %v939
    %v948 = vadd.f32 %v912, %v939
    %v949 = vadd.f32 %v913, %v939
    %v950 = vadd.f32 %v914, %v939
    %v951 = vadd.f32 %v915, %v939
    %v952 = vadd.f32 %v916, %v939
    %v953 = vadd.f32 %v917, %v939
    %v954 = vadd.f32 %v918, %v939
    %v955 = vadd.f32 %v919, %v939
    %v956 = vadd.f32 %v920, %v939
    %v957 = vadd.f32 %v921, %v939
    %v958 = vadd.f32 %v922, %v939
    %v959 = vadd.f32 %v923, %v939
    %v960 = vadd.f32 %v924, %v939
    %v961 = vadd.f32 %v925, %v939
    %v962 = vadd.f32 %v926, %v939
    %v963 = vadd.f32 %v927, %v939
    %v964 = vadd.f32 %v928, %v939
    %v965 = vadd.f32 %v929, %v939
    %v966 = vadd.f32 %v930, %v939
    %v967 = vadd.f32 %v931, %v939
    %v968 = vadd.f32 %v932, %v939
    %v969 = vadd.f32 %v933, %v939
    %v970 = vadd.f32 %v934, %v939
    %v971 = vadd.f32 %v935, %v939
    %v972 = vmax.f32 %v940, 0.0
    %v973 = vmax.f32 %v941, 0.0
    %v974 = vmax.f32 %v942, 0.0
    %v975 = vmax.f32 %v943, 0.0
    %v976 = vmax.f32 %v944, 0.0
    %v977 = vmax.f32 %v945, 0.0
    %v978 = vmax.f32 %v946, 0.0
    %v979 = vmax.f32 %v947, 0.0
    %v980 = vmax.f32 %v948, 0.0
    %v981 = vmax.f32 %v949, 0.0
    %v982 = vmax.f32 %v950, 0.0
    %v983 = vmax.f32 %v951, 0.0
    %v984 = vmax.f32 %v952, 0.0
    %v985 = vmax.f32 %v953, 0.0
    %v986 = vmax.f32 %v954, 0.0
    %v987 = vmax.f32 %v955, 0.0
    %v988 = vmax.f32 %v956, 0.0
    %v989 = vmax.f32 %v957, 0.0
    %v990 = vmax.f32 %v958, 0.0
    %v991 = vmax.f32 %v959, 0.0
    %v992 = vmax.f32 %v960, 0.0
    %v993 = vmax.f32 %v961, 0.0
    %v994 = vmax.f32 %v962, 0.0
    %v995 = vmax.f32 %v963, 0.0
    %v996 = vmax.f32 %v964, 0.0
    %v997 = vmax.f32 %v965, 0.0
    %v998 = vmax.f32 %v966, 0.0
    %v999 = vmax.f32 %v967, 0.0
    %v1000 = vmax.f32 %v968, 0.0
    %v1001 = vmax.f32 %v969, 0.0
    %v1002 = vmax.f32 %v970, 0.0
    %v1003 = vmax.f32 %v971, 0.0
    %v1004 = vld [vmem:[%s2] sm:$0xff]
    %v1005 = vld [vmem:[%s2 + $0x8] sm:$0xff]
    %v1006 = vld [vmem:[%s2 + $0x10] sm:$0xff]
    %v1007 = vld [vmem:[%s2 + $0x18] sm:$0xff]
    %v1008 = vld [vmem:[%s2 + $0x20] sm:$0xff]
    %v1009 = vld [vmem:[%s2 + $0x28] sm:$0xff]
    %v1010 = vld [vmem:[%s2 + $0x30] sm:$0xff]
    %v1011 = vld [vmem:[%s2 + $0x38] sm:$0xff]
    %v1012 = vld [vmem:[%s2 + $0x40] sm:$0xff]
    %v1013 = vld [vmem:[%s2 + $0x48] sm:$0xff]
    %v1014 = vld [vmem:[%s2 + $0x50] sm:$0xff]
    %v1015 = vld [vmem:[%s2 + $0x58] sm:$0xff]
    %v1016 = vld [vmem:[%s2 + $0x60] sm:$0xff]
    %v1017 = vld [vmem:[%s2 + $0x68] sm:$0xff]
    %v1018 = vld [vmem:[%s2 + $0x70] sm:$0xff]
    %v1019 = vld [vmem:[%s2 + $0x78] sm:$0xff]
    %v1020 = vlaneseq
    %v1021 = vshrl.u32 %v1020, 7
    %v1022 = vsub.s32 3, %v1021
    %v1023 = vrot.slane %v53, %v1022
    %1024 = vmatprep.subr.mxu0 0.0
    %1025 = vmatpush1.msra.mxu0 %v1019
    %1026 = vmatprep.subr.mxu0 0.0
    %1027 = vmatpush1.msra.mxu0 %v1018
    %1028 = vmatprep.subr.mxu0 0.0
    %1029 = vmatpush1.msra.mxu0 %v1017
    %1030 = vmatprep.subr.mxu0 0.0
    %1031 = vmatpush1.msra.mxu0 %v1016
    %1032 = vmatprep.subr.mxu0 0.0
    %1033 = vmatpush1.msra.mxu0 %v1015
    %1034 = vmatprep.subr.mxu0 0.0
    %1035 = vmatpush1.msra.mxu0 %v1014
    %1036 = vmatprep.subr.mxu0 0.0
    %1037 = vmatpush1.msra.mxu0 %v1013
    %1038 = vmatprep.subr.mxu0 0.0
    %1039 = vmatpush1.msra.mxu0 %v1012
    %1040 = vmatprep.subr.mxu0 0.0
    %1041 = vmatpush1.msra.mxu0 %v1011
    %1042 = vmatprep.subr.mxu0 0.0
    %1043 = vmatpush1.msra.mxu0 %v1010
    %1044 = vmatprep.subr.mxu0 0.0
    %1045 = vmatpush1.msra.mxu0 %v1009
    %1046 = vmatprep.subr.mxu0 0.0
    %1047 = vmatpush1.msra.mxu0 %v1008
    %1048 = vmatprep.subr.mxu0 0.0
    %1049 = vmatpush1.msra.mxu0 %v1007
    %1050 = vmatprep.subr.mxu0 0.0
    %1051 = vmatpush1.msra.mxu0 %v1006
    %1052 = vmatprep.subr.mxu0 0.0
    %1053 = vmatpush1.msra.mxu0 %v1005
    %1054 = vmatprep.subr.mxu0 0.0
    %1055 = vmatpush1.msra.mxu0 %v1004
    %1056 = vmatprep.subr.mxu0 0.0
    %1057 = vmatpush2.msra.mxu0 0.0
    %1058 = vmatprep.subr.mxu0 0.0
    %1059 = vmatpush2.msra.mxu0 0.0
    %1060 = vmatprep.subr.mxu0 0.0
    %1061 = vmatpush2.msra.mxu0 0.0
    %1062 = vmatprep.subr.mxu0 0.0
    %1063 = vmatpush2.msra.mxu0 0.0
    %1064 = vmatprep.subr.mxu0 0.0
    %1065 = vmatpush2.msra.mxu0 0.0
    %1066 = vmatprep.subr.mxu0 0.0
    %1067 = vmatpush2.msra.mxu0 0.0
    %1068 = vmatprep.subr.mxu0 0.0
    %1069 = vmatpush2.msra.mxu0 0.0
    %1070 = vmatprep.subr.mxu0 0.0
    %1071 = vmatpush2.msra.mxu0 0.0
    %1072 = vmatprep.subr.mxu0 0.0
    %1073 = vmatpush2.msra.mxu0 0.0
    %1074 = vmatprep.subr.mxu0 0.0
    %1075 = vmatpush2.msra.mxu0 0.0
    %1076 = vmatprep.subr.mxu0 0.0
    %1077 = vmatpush2.msra.mxu0 0.0
    %1078 = vmatprep.subr.mxu0 0.0
    %1079 = vmatpush2.msra.mxu0 0.0
    %1080 = vmatprep.subr.mxu0 0.0
    %1081 = vmatpush2.msra.mxu0 0.0
    %1082 = vmatprep.subr.mxu0 0.0
    %1083 = vmatpush2.msra.mxu0 0.0
    %1084 = vmatprep.subr.mxu0 0.0
    %1085 = vmatpush2.msra.mxu0 0.0
    %1086 = vmatprep.subr.mxu0 0.0
    %1087 = vmatpush2.msra.mxu0 0.0
    %1088 = vmatprep.mubr.f32.mxu0 0.0
    %1089 = vmatmul.mubr.f32.gmra.mxu0 %v972
    %v1090 = vpop.f32.mrf.mxu0
    %v1091 = vadd.f32 %v1023, %v1090
    %v1092 = vpop.f32.mrf.mxu0
    %1093 = vmatprep.mubr.f32.mxu0 0.0
    %1094 = vmatmul.mubr.f32.gmra.mxu0 %v973
    %v1095 = vpop.f32.mrf.mxu0
    %v1096 = vadd.f32 %v1023, %v1095
    %v1097 = vpop.f32.mrf.mxu0
    %1098 = vmatprep.mubr.f32.mxu0 0.0
    %1099 = vmatmul.mubr.f32.gmra.mxu0 %v974
    %v1100 = vpop.f32.mrf.mxu0
    %v1101 = vadd.f32 %v1023, %v1100
    %v1102 = vpop.f32.mrf.mxu0
    %1103 = vmatprep.mubr.f32.mxu0 0.0
    %1104 = vmatmul.mubr.f32.gmra.mxu0 %v975
    %v1105 = vpop.f32.mrf.mxu0
    %v1106 = vadd.f32 %v1023, %v1105
    %v1107 = vpop.f32.mrf.mxu0
    %1108 = vmatprep.mubr.f32.mxu0 0.0
    %1109 = vmatmul.mubr.f32.gmra.mxu0 %v976
    %v1110 = vpop.f32.mrf.mxu0
    %v1111 = vadd.f32 %v1023, %v1110
    %v1112 = vpop.f32.mrf.mxu0
    %1113 = vmatprep.mubr.f32.mxu0 0.0
    %1114 = vmatmul.mubr.f32.gmra.mxu0 %v977
    %v1115 = vpop.f32.mrf.mxu0
    %v1116 = vadd.f32 %v1023, %v1115
    %v1117 = vpop.f32.mrf.mxu0
    %1118 = vmatprep.mubr.f32.mxu0 0.0
    %1119 = vmatmul.mubr.f32.gmra.mxu0 %v978
    %v1120 = vpop.f32.mrf.mxu0
    %v1121 = vadd.f32 %v1023, %v1120
    %v1122 = vpop.f32.mrf.mxu0
    %1123 = vmatprep.mubr.f32.mxu0 0.0
    %1124 = vmatmul.mubr.f32.gmra.mxu0 %v979
    %v1125 = vpop.f32.mrf.mxu0
    %v1126 = vadd.f32 %v1023, %v1125
    %v1127 = vpop.f32.mrf.mxu0
    %1128 = vmatprep.mubr.f32.mxu0 0.0
    %1129 = vmatmul.mubr.f32.gmra.mxu0 %v980
    %v1130 = vpop.f32.mrf.mxu0
    %v1131 = vadd.f32 %v1023, %v1130
    %v1132 = vpop.f32.mrf.mxu0
    %1133 = vmatprep.mubr.f32.mxu0 0.0
    %1134 = vmatmul.mubr.f32.gmra.mxu0 %v981
    %v1135 = vpop.f32.mrf.mxu0
    %v1136 = vadd.f32 %v1023, %v1135
    %v1137 = vpop.f32.mrf.mxu0
    %1138 = vmatprep.mubr.f32.mxu0 0.0
    %1139 = vmatmul.mubr.f32.gmra.mxu0 %v982
    %v1140 = vpop.f32.mrf.mxu0
    %v1141 = vadd.f32 %v1023, %v1140
    %v1142 = vpop.f32.mrf.mxu0
    %1143 = vmatprep.mubr.f32.mxu0 0.0
    %1144 = vmatmul.mubr.f32.gmra.mxu0 %v983
    %v1145 = vpop.f32.mrf.mxu0
    %v1146 = vadd.f32 %v1023, %v1145
    %v1147 = vpop.f32.mrf.mxu0
    %1148 = vmatprep.mubr.f32.mxu0 0.0
    %1149 = vmatmul.mubr.f32.gmra.mxu0 %v984
    %v1150 = vpop.f32.mrf.mxu0
    %v1151 = vadd.f32 %v1023, %v1150
    %v1152 = vpop.f32.mrf.mxu0
    %1153 = vmatprep.mubr.f32.mxu0 0.0
    %1154 = vmatmul.mubr.f32.gmra.mxu0 %v985
    %v1155 = vpop.f32.mrf.mxu0
    %v1156 = vadd.f32 %v1023, %v1155
    %v1157 = vpop.f32.mrf.mxu0
    %1158 = vmatprep.mubr.f32.mxu0 0.0
    %1159 = vmatmul.mubr.f32.gmra.mxu0 %v986
    %v1160 = vpop.f32.mrf.mxu0
    %v1161 = vadd.f32 %v1023, %v1160
    %v1162 = vpop.f32.mrf.mxu0
    %1163 = vmatprep.mubr.f32.mxu0 0.0
    %1164 = vmatmul.mubr.f32.gmra.mxu0 %v987
    %v1165 = vpop.f32.mrf.mxu0
    %v1166 = vadd.f32 %v1023, %v1165
    %v1167 = vpop.f32.mrf.mxu0
    %1168 = vmatprep.mubr.f32.mxu0 0.0
    %1169 = vmatmul.mubr.f32.gmra.mxu0 %v988
    %v1170 = vpop.f32.mrf.mxu0
    %v1171 = vadd.f32 %v1023, %v1170
    %v1172 = vpop.f32.mrf.mxu0
    %1173 = vmatprep.mubr.f32.mxu0 0.0
    %1174 = vmatmul.mubr.f32.gmra.mxu0 %v989
    %v1175 = vpop.f32.mrf.mxu0
    %v1176 = vadd.f32 %v1023, %v1175
    %v1177 = vpop.f32.mrf.mxu0
    %1178 = vmatprep.mubr.f32.mxu0 0.0
    %1179 = vmatmul.mubr.f32.gmra.mxu0 %v990
    %v1180 = vpop.f32.mrf.mxu0
    %v1181 = vadd.f32 %v1023, %v1180
    %v1182 = vpop.f32.mrf.mxu0
    %1183 = vmatprep.mubr.f32.mxu0 0.0
    %1184 = vmatmul.mubr.f32.gmra.mxu0 %v991
    %v1185 = vpop.f32.mrf.mxu0
    %v1186 = vadd.f32 %v1023, %v1185
    %v1187 = vpop.f32.mrf.mxu0
    %1188 = vmatprep.mubr.f32.mxu0 0.0
    %1189 = vmatmul.mubr.f32.gmra.mxu0 %v992
    %v1190 = vpop.f32.mrf.mxu0
    %v1191 = vadd.f32 %v1023, %v1190
    %v1192 = vpop.f32.mrf.mxu0
    %1193 = vmatprep.mubr.f32.mxu0 0.0
    %1194 = vmatmul.mubr.f32.gmra.mxu0 %v993
    %v1195 = vpop.f32.mrf.mxu0
    %v1196 = vadd.f32 %v1023, %v1195
    %v1197 = vpop.f32.mrf.mxu0
    %1198 = vmatprep.mubr.f32.mxu0 0.0
    %1199 = vmatmul.mubr.f32.gmra.mxu0 %v994
    %v1200 = vpop.f32.mrf.mxu0
    %v1201 = vadd.f32 %v1023, %v1200
    %v1202 = vpop.f32.mrf.mxu0
    %1203 = vmatprep.mubr.f32.mxu0 0.0
    %1204 = vmatmul.mubr.f32.gmra.mxu0 %v995
    %v1205 = vpop.f32.mrf.mxu0
    %v1206 = vadd.f32 %v1023, %v1205
    %v1207 = vpop.f32.mrf.mxu0
    %1208 = vmatprep.mubr.f32.mxu0 0.0
    %1209 = vmatmul.mubr.f32.gmra.mxu0 %v996
    %v1210 = vpop.f32.mrf.mxu0
    %v1211 = vadd.f32 %v1023, %v1210
    %v1212 = vpop.f32.mrf.mxu0
    %1213 = vmatprep.mubr.f32.mxu0 0.0
    %1214 = vmatmul.mubr.f32.gmra.mxu0 %v997
    %v1215 = vpop.f32.mrf.mxu0
    %v1216 = vadd.f32 %v1023, %v1215
    %v1217 = vpop.f32.mrf.mxu0
    %1218 = vmatprep.mubr.f32.mxu0 0.0
    %1219 = vmatmul.mubr.f32.gmra.mxu0 %v998
    %v1220 = vpop.f32.mrf.mxu0
    %v1221 = vadd.f32 %v1023, %v1220
    %v1222 = vpop.f32.mrf.mxu0
    %1223 = vmatprep.mubr.f32.mxu0 0.0
    %1224 = vmatmul.mubr.f32.gmra.mxu0 %v999
    %v1225 = vpop.f32.mrf.mxu0
    %v1226 = vadd.f32 %v1023, %v1225
    %v1227 = vpop.f32.mrf.mxu0
    %1228 = vmatprep.mubr.f32.mxu0 0.0
    %1229 = vmatmul.mubr.f32.gmra.mxu0 %v1000
    %v1230 = vpop.f32.mrf.mxu0
    %v1231 = vadd.f32 %v1023, %v1230
    %v1232 = vpop.f32.mrf.mxu0
    %1233 = vmatprep.mubr.f32.mxu0 0.0
    %1234 = vmatmul.mubr.f32.gmra.mxu0 %v1001
    %v1235 = vpop.f32.mrf.mxu0
    %v1236 = vadd.f32 %v1023, %v1235
    %v1237 = vpop.f32.mrf.mxu0
    %1238 = vmatprep.mubr.f32.mxu0 0.0
    %1239 = vmatmul.mubr.f32.gmra.mxu0 %v1002
    %v1240 = vpop.f32.mrf.mxu0
    %v1241 = vadd.f32 %v1023, %v1240
    %v1242 = vpop.f32.mrf.mxu0
    %1243 = vmatprep.mubr.f32.mxu0 0.0
    %1244 = vmatmul.mubr.f32.gmra.mxu0 %v1003
    %v1245 = vpop.f32.mrf.mxu0
    %v1246 = vadd.f32 %v1023, %v1245
    %v1247 = vpop.f32.mrf.mxu0
    %1248 = vdwg.mxu0
    %1249 = vadd.xlane.f32.xlu0 %v1091
    %v1250 = vpop.xlane.xlu0 %1249
    %1251 = vadd.xlane.f32.xlu0 %v1096
    %v1252 = vpop.xlane.xlu0 %1251
    %1253 = vadd.xlane.f32.xlu0 %v1101
    %v1254 = vpop.xlane.xlu0 %1253
    %1255 = vadd.xlane.f32.xlu0 %v1106
    %v1256 = vpop.xlane.xlu0 %1255
    %1257 = vadd.xlane.f32.xlu0 %v1111
    %v1258 = vpop.xlane.xlu0 %1257
    %1259 = vadd.xlane.f32.xlu0 %v1116
    %v1260 = vpop.xlane.xlu0 %1259
    %1261 = vadd.xlane.f32.xlu0 %v1121
    %v1262 = vpop.xlane.xlu0 %1261
    %1263 = vadd.xlane.f32.xlu0 %v1126
    %v1264 = vpop.xlane.xlu0 %1263
    %1265 = vadd.xlane.f32.xlu0 %v1131
    %v1266 = vpop.xlane.xlu0 %1265
    %1267 = vadd.xlane.f32.xlu0 %v1136
    %v1268 = vpop.xlane.xlu0 %1267
    %1269 = vadd.xlane.f32.xlu0 %v1141
    %v1270 = vpop.xlane.xlu0 %1269
    %1271 = vadd.xlane.f32.xlu0 %v1146
    %v1272 = vpop.xlane.xlu0 %1271
    %1273 = vadd.xlane.f32.xlu0 %v1151
    %v1274 = vpop.xlane.xlu0 %1273
    %1275 = vadd.xlane.f32.xlu0 %v1156
    %v1276 = vpop.xlane.xlu0 %1275
    %1277 = vadd.xlane.f32.xlu0 %v1161
    %v1278 = vpop.xlane.xlu0 %1277
    %1279 = vadd.xlane.f32.xlu0 %v1166
    %v1280 = vpop.xlane.xlu0 %1279
    %1281 = vadd.xlane.f32.xlu0 %v1171
    %v1282 = vpop.xlane.xlu0 %1281
    %1283 = vadd.xlane.f32.xlu0 %v1176
    %v1284 = vpop.xlane.xlu0 %1283
    %1285 = vadd.xlane.f32.xlu0 %v1181
    %v1286 = vpop.xlane.xlu0 %1285
    %1287 = vadd.xlane.f32.xlu0 %v1186
    %v1288 = vpop.xlane.xlu0 %1287
    %1289 = vadd.xlane.f32.xlu0 %v1191
    %v1290 = vpop.xlane.xlu0 %1289
    %1291 = vadd.xlane.f32.xlu0 %v1196
    %v1292 = vpop.xlane.xlu0 %1291
    %1293 = vadd.xlane.f32.xlu0 %v1201
    %v1294 = vpop.xlane.xlu0 %1293
    %1295 = vadd.xlane.f32.xlu0 %v1206
    %v1296 = vpop.xlane.xlu0 %1295
    %1297 = vadd.xlane.f32.xlu0 %v1211
    %v1298 = vpop.xlane.xlu0 %1297
    %1299 = vadd.xlane.f32.xlu0 %v1216
    %v1300 = vpop.xlane.xlu0 %1299
    %1301 = vadd.xlane.f32.xlu0 %v1221
    %v1302 = vpop.xlane.xlu0 %1301
    %1303 = vadd.xlane.f32.xlu0 %v1226
    %v1304 = vpop.xlane.xlu0 %1303
    %1305 = vadd.xlane.f32.xlu0 %v1231
    %v1306 = vpop.xlane.xlu0 %1305
    %1307 = vadd.xlane.f32.xlu0 %v1236
    %v1308 = vpop.xlane.xlu0 %1307
    %1309 = vadd.xlane.f32.xlu0 %v1241
    %v1310 = vpop.xlane.xlu0 %1309
    %1311 = vadd.xlane.f32.xlu0 %v1246
    %v1312 = vpop.xlane.xlu0 %1311
    %v1313 = vmul.f32 %v1250, 0.03125
    %v1314 = vmul.f32 %v1252, 0.03125
    %v1315 = vmul.f32 %v1254, 0.03125
    %v1316 = vmul.f32 %v1256, 0.03125
    %v1317 = vmul.f32 %v1258, 0.03125
    %v1318 = vmul.f32 %v1260, 0.03125
    %v1319 = vmul.f32 %v1262, 0.03125
    %v1320 = vmul.f32 %v1264, 0.03125
    %v1321 = vmul.f32 %v1266, 0.03125
    %v1322 = vmul.f32 %v1268, 0.03125
    %v1323 = vmul.f32 %v1270, 0.03125
    %v1324 = vmul.f32 %v1272, 0.03125
    %v1325 = vmul.f32 %v1274, 0.03125
    %v1326 = vmul.f32 %v1276, 0.03125
    %v1327 = vmul.f32 %v1278, 0.03125
    %v1328 = vmul.f32 %v1280, 0.03125
    %v1329 = vmul.f32 %v1282, 0.03125
    %v1330 = vmul.f32 %v1284, 0.03125
    %v1331 = vmul.f32 %v1286, 0.03125
    %v1332 = vmul.f32 %v1288, 0.03125
    %v1333 = vmul.f32 %v1290, 0.03125
    %v1334 = vmul.f32 %v1292, 0.03125
    %v1335 = vmul.f32 %v1294, 0.03125
    %v1336 = vmul.f32 %v1296, 0.03125
    %v1337 = vmul.f32 %v1298, 0.03125
    %v1338 = vmul.f32 %v1300, 0.03125
    %v1339 = vmul.f32 %v1302, 0.03125
    %v1340 = vmul.f32 %v1304, 0.03125
    %v1341 = vmul.f32 %v1306, 0.03125
    %v1342 = vmul.f32 %v1308, 0.03125
    %v1343 = vmul.f32 %v1310, 0.03125
    %v1344 = vmul.f32 %v1312, 0.03125
    %v1345 = vmul.f32 %v1091, %v1091
    %v1346 = vmul.f32 %v1096, %v1096
    %v1347 = vmul.f32 %v1101, %v1101
    %v1348 = vmul.f32 %v1106, %v1106
    %v1349 = vmul.f32 %v1111, %v1111
    %v1350 = vmul.f32 %v1116, %v1116
    %v1351 = vmul.f32 %v1121, %v1121
    %v1352 = vmul.f32 %v1126, %v1126
    %v1353 = vmul.f32 %v1131, %v1131
    %v1354 = vmul.f32 %v1136, %v1136
    %v1355 = vmul.f32 %v1141, %v1141
    %v1356 = vmul.f32 %v1146, %v1146
    %v1357 = vmul.f32 %v1151, %v1151
    %v1358 = vmul.f32 %v1156, %v1156
    %v1359 = vmul.f32 %v1161, %v1161
    %v1360 = vmul.f32 %v1166, %v1166
    %v1361 = vmul.f32 %v1171, %v1171
    %v1362 = vmul.f32 %v1176, %v1176
    %v1363 = vmul.f32 %v1181, %v1181
    %v1364 = vmul.f32 %v1186, %v1186
    %v1365 = vmul.f32 %v1191, %v1191
    %v1366 = vmul.f32 %v1196, %v1196
    %v1367 = vmul.f32 %v1201, %v1201
    %v1368 = vmul.f32 %v1206, %v1206
    %v1369 = vmul.f32 %v1211, %v1211
    %v1370 = vmul.f32 %v1216, %v1216
    %v1371 = vmul.f32 %v1221, %v1221
    %v1372 = vmul.f32 %v1226, %v1226
    %v1373 = vmul.f32 %v1231, %v1231
    %v1374 = vmul.f32 %v1236, %v1236
    %v1375 = vmul.f32 %v1241, %v1241
    %v1376 = vmul.f32 %v1246, %v1246
    %1377 = vadd.xlane.f32.xlu0 %v1345
    %v1378 = vpop.xlane.xlu0 %1377
    %1379 = vadd.xlane.f32.xlu0 %v1346
    %v1380 = vpop.xlane.xlu0 %1379
    %1381 = vadd.xlane.f32.xlu0 %v1347
    %v1382 = vpop.xlane.xlu0 %1381
    %1383 = vadd.xlane.f32.xlu0 %v1348
    %v1384 = vpop.xlane.xlu0 %1383
    %1385 = vadd.xlane.f32.xlu0 %v1349
    %v1386 = vpop.xlane.xlu0 %1385
    %1387 = vadd.xlane.f32.xlu0 %v1350
    %v1388 = vpop.xlane.xlu0 %1387
    %1389 = vadd.xlane.f32.xlu0 %v1351
    %v1390 = vpop.xlane.xlu0 %1389
    %1391 = vadd.xlane.f32.xlu0 %v1352
    %v1392 = vpop.xlane.xlu0 %1391
    %1393 = vadd.xlane.f32.xlu0 %v1353
    %v1394 = vpop.xlane.xlu0 %1393
    %1395 = vadd.xlane.f32.xlu0 %v1354
    %v1396 = vpop.xlane.xlu0 %1395
    %1397 = vadd.xlane.f32.xlu0 %v1355
    %v1398 = vpop.xlane.xlu0 %1397
    %1399 = vadd.xlane.f32.xlu0 %v1356
    %v1400 = vpop.xlane.xlu0 %1399
    %1401 = vadd.xlane.f32.xlu0 %v1357
    %v1402 = vpop.xlane.xlu0 %1401
    %1403 = vadd.xlane.f32.xlu0 %v1358
    %v1404 = vpop.xlane.xlu0 %1403
    %1405 = vadd.xlane.f32.xlu0 %v1359
    %v1406 = vpop.xlane.xlu0 %1405
    %1407 = vadd.xlane.f32.xlu0 %v1360
    %v1408 = vpop.xlane.xlu0 %1407
    %1409 = vadd.xlane.f32.xlu0 %v1361
    %v1410 = vpop.xlane.xlu0 %1409
    %1411 = vadd.xlane.f32.xlu0 %v1362
    %v1412 = vpop.xlane.xlu0 %1411
    %1413 = vadd.xlane.f32.xlu0 %v1363
    %v1414 = vpop.xlane.xlu0 %1413
    %1415 = vadd.xlane.f32.xlu0 %v1364
    %v1416 = vpop.xlane.xlu0 %1415
    %1417 = vadd.xlane.f32.xlu0 %v1365
    %v1418 = vpop.xlane.xlu0 %1417
    %1419 = vadd.xlane.f32.xlu0 %v1366
    %v1420 = vpop.xlane.xlu0 %1419
    %1421 = vadd.xlane.f32.xlu0 %v1367
    %v1422 = vpop.xlane.xlu0 %1421
    %1423 = vadd.xlane.f32.xlu0 %v1368
    %v1424 = vpop.xlane.xlu0 %1423
    %1425 = vadd.xlane.f32.xlu0 %v1369
    %v1426 = vpop.xlane.xlu0 %1425
    %1427 = vadd.xlane.f32.xlu0 %v1370
    %v1428 = vpop.xlane.xlu0 %1427
    %1429 = vadd.xlane.f32.xlu0 %v1371
    %v1430 = vpop.xlane.xlu0 %1429
    %1431 = vadd.xlane.f32.xlu0 %v1372
    %v1432 = vpop.xlane.xlu0 %1431
    %1433 = vadd.xlane.f32.xlu0 %v1373
    %v1434 = vpop.xlane.xlu0 %1433
    %1435 = vadd.xlane.f32.xlu0 %v1374
    %v1436 = vpop.xlane.xlu0 %1435
    %1437 = vadd.xlane.f32.xlu0 %v1375
    %v1438 = vpop.xlane.xlu0 %1437
    %1439 = vadd.xlane.f32.xlu0 %v1376
    %v1440 = vpop.xlane.xlu0 %1439
    %v1441 = vmul.f32 %v1378, 0.03125
    %v1442 = vmul.f32 %v1380, 0.03125
    %v1443 = vmul.f32 %v1382, 0.03125
    %v1444 = vmul.f32 %v1384, 0.03125
    %v1445 = vmul.f32 %v1386, 0.03125
    %v1446 = vmul.f32 %v1388, 0.03125
    %v1447 = vmul.f32 %v1390, 0.03125
    %v1448 = vmul.f32 %v1392, 0.03125
    %v1449 = vmul.f32 %v1394, 0.03125
    %v1450 = vmul.f32 %v1396, 0.03125
    %v1451 = vmul.f32 %v1398, 0.03125
    %v1452 = vmul.f32 %v1400, 0.03125
    %v1453 = vmul.f32 %v1402, 0.03125
    %v1454 = vmul.f32 %v1404, 0.03125
    %v1455 = vmul.f32 %v1406, 0.03125
    %v1456 = vmul.f32 %v1408, 0.03125
    %v1457 = vmul.f32 %v1410, 0.03125
    %v1458 = vmul.f32 %v1412, 0.03125
    %v1459 = vmul.f32 %v1414, 0.03125
    %v1460 = vmul.f32 %v1416, 0.03125
    %v1461 = vmul.f32 %v1418, 0.03125
    %v1462 = vmul.f32 %v1420, 0.03125
    %v1463 = vmul.f32 %v1422, 0.03125
    %v1464 = vmul.f32 %v1424, 0.03125
    %v1465 = vmul.f32 %v1426, 0.03125
    %v1466 = vmul.f32 %v1428, 0.03125
    %v1467 = vmul.f32 %v1430, 0.03125
    %v1468 = vmul.f32 %v1432, 0.03125
    %v1469 = vmul.f32 %v1434, 0.03125
    %v1470 = vmul.f32 %v1436, 0.03125
    %v1471 = vmul.f32 %v1438, 0.03125
    %v1472 = vmul.f32 %v1440, 0.03125
    %v1473 = vmul.f32 %v1313, %v1313
    %v1474 = vmul.f32 %v1314, %v1314
    %v1475 = vmul.f32 %v1315, %v1315
    %v1476 = vmul.f32 %v1316, %v1316
    %v1477 = vmul.f32 %v1317, %v1317
    %v1478 = vmul.f32 %v1318, %v1318
    %v1479 = vmul.f32 %v1319, %v1319
    %v1480 = vmul.f32 %v1320, %v1320
    %v1481 = vmul.f32 %v1321, %v1321
    %v1482 = vmul.f32 %v1322, %v1322
    %v1483 = vmul.f32 %v1323, %v1323
    %v1484 = vmul.f32 %v1324, %v1324
    %v1485 = vmul.f32 %v1325, %v1325
    %v1486 = vmul.f32 %v1326, %v1326
    %v1487 = vmul.f32 %v1327, %v1327
    %v1488 = vmul.f32 %v1328, %v1328
    %v1489 = vmul.f32 %v1329, %v1329
    %v1490 = vmul.f32 %v1330, %v1330
    %v1491 = vmul.f32 %v1331, %v1331
    %v1492 = vmul.f32 %v1332, %v1332
    %v1493 = vmul.f32 %v1333, %v1333
    %v1494 = vmul.f32 %v1334, %v1334
    %v1495 = vmul.f32 %v1335, %v1335
    %v1496 = vmul.f32 %v1336, %v1336
    %v1497 = vmul.f32 %v1337, %v1337
    %v1498 = vmul.f32 %v1338, %v1338
    %v1499 = vmul.f32 %v1339, %v1339
    %v1500 = vmul.f32 %v1340, %v1340
    %v1501 = vmul.f32 %v1341, %v1341
    %v1502 = vmul.f32 %v1342, %v1342
    %v1503 = vmul.f32 %v1343, %v1343
    %v1504 = vmul.f32 %v1344, %v1344
    %v1505 = vsub.f32 %v1441, %v1473
    %v1506 = vsub.f32 %v1442, %v1474
    %v1507 = vsub.f32 %v1443, %v1475
    %v1508 = vsub.f32 %v1444, %v1476
    %v1509 = vsub.f32 %v1445, %v1477
    %v1510 = vsub.f32 %v1446, %v1478
    %v1511 = vsub.f32 %v1447, %v1479
    %v1512 = vsub.f32 %v1448, %v1480
    %v1513 = vsub.f32 %v1449, %v1481
    %v1514 = vsub.f32 %v1450, %v1482
    %v1515 = vsub.f32 %v1451, %v1483
    %v1516 = vsub.f32 %v1452, %v1484
    %v1517 = vsub.f32 %v1453, %v1485
    %v1518 = vsub.f32 %v1454, %v1486
    %v1519 = vsub.f32 %v1455, %v1487
    %v1520 = vsub.f32 %v1456, %v1488
    %v1521 = vsub.f32 %v1457, %v1489
    %v1522 = vsub.f32 %v1458, %v1490
    %v1523 = vsub.f32 %v1459, %v1491
    %v1524 = vsub.f32 %v1460, %v1492
    %v1525 = vsub.f32 %v1461, %v1493
    %v1526 = vsub.f32 %v1462, %v1494
    %v1527 = vsub.f32 %v1463, %v1495
    %v1528 = vsub.f32 %v1464, %v1496
    %v1529 = vsub.f32 %v1465, %v1497
    %v1530 = vsub.f32 %v1466, %v1498
    %v1531 = vsub.f32 %v1467, %v1499
    %v1532 = vsub.f32 %v1468, %v1500
    %v1533 = vsub.f32 %v1469, %v1501
    %v1534 = vsub.f32 %v1470, %v1502
    %v1535 = vsub.f32 %v1471, %v1503
    %v1536 = vsub.f32 %v1472, %v1504
    %v1537 = vsub.f32 %v1091, %v1313
    %v1538 = vsub.f32 %v1096, %v1314
    %v1539 = vsub.f32 %v1101, %v1315
    %v1540 = vsub.f32 %v1106, %v1316
    %v1541 = vsub.f32 %v1111, %v1317
    %v1542 = vsub.f32 %v1116, %v1318
    %v1543 = vsub.f32 %v1121, %v1319
    %v1544 = vsub.f32 %v1126, %v1320
    %v1545 = vsub.f32 %v1131, %v1321
    %v1546 = vsub.f32 %v1136, %v1322
    %v1547 = vsub.f32 %v1141, %v1323
    %v1548 = vsub.f32 %v1146, %v1324
    %v1549 = vsub.f32 %v1151, %v1325
    %v1550 = vsub.f32 %v1156, %v1326
    %v1551 = vsub.f32 %v1161, %v1327
    %v1552 = vsub.f32 %v1166, %v1328
    %v1553 = vsub.f32 %v1171, %v1329
    %v1554 = vsub.f32 %v1176, %v1330
    %v1555 = vsub.f32 %v1181, %v1331
    %v1556 = vsub.f32 %v1186, %v1332
    %v1557 = vsub.f32 %v1191, %v1333
    %v1558 = vsub.f32 %v1196, %v1334
    %v1559 = vsub.f32 %v1201, %v1335
    %v1560 = vsub.f32 %v1206, %v1336
    %v1561 = vsub.f32 %v1211, %v1337
    %v1562 = vsub.f32 %v1216, %v1338
    %v1563 = vsub.f32 %v1221, %v1339
    %v1564 = vsub.f32 %v1226, %v1340
    %v1565 = vsub.f32 %v1231, %v1341
    %v1566 = vsub.f32 %v1236, %v1342
    %v1567 = vsub.f32 %v1241, %v1343
    %v1568 = vsub.f32 %v1246, %v1344
    %v1569 = vadd.f32 %v1505, 1e-05
    %v1570 = vadd.f32 %v1506, 1e-05
    %v1571 = vadd.f32 %v1507, 1e-05
    %v1572 = vadd.f32 %v1508, 1e-05
    %v1573 = vadd.f32 %v1509, 1e-05
    %v1574 = vadd.f32 %v1510, 1e-05
    %v1575 = vadd.f32 %v1511, 1e-05
    %v1576 = vadd.f32 %v1512, 1e-05
    %v1577 = vadd.f32 %v1513, 1e-05
    %v1578 = vadd.f32 %v1514, 1e-05
    %v1579 = vadd.f32 %v1515, 1e-05
    %v1580 = vadd.f32 %v1516, 1e-05
    %v1581 = vadd.f32 %v1517, 1e-05
    %v1582 = vadd.f32 %v1518, 1e-05
    %v1583 = vadd.f32 %v1519, 1e-05
    %v1584 = vadd.f32 %v1520, 1e-05
    %v1585 = vadd.f32 %v1521, 1e-05
    %v1586 = vadd.f32 %v1522, 1e-05
    %v1587 = vadd.f32 %v1523, 1e-05
    %v1588 = vadd.f32 %v1524, 1e-05
    %v1589 = vadd.f32 %v1525, 1e-05
    %v1590 = vadd.f32 %v1526, 1e-05
    %v1591 = vadd.f32 %v1527, 1e-05
    %v1592 = vadd.f32 %v1528, 1e-05
    %v1593 = vadd.f32 %v1529, 1e-05
    %v1594 = vadd.f32 %v1530, 1e-05
    %v1595 = vadd.f32 %v1531, 1e-05
    %v1596 = vadd.f32 %v1532, 1e-05
    %v1597 = vadd.f32 %v1533, 1e-05
    %v1598 = vadd.f32 %v1534, 1e-05
    %v1599 = vadd.f32 %v1535, 1e-05
    %v1600 = vadd.f32 %v1536, 1e-05
    %v1601 = vrsqrt.pop %v1569
    %v1602 = vrsqrt.pop %v1570
    %v1603 = vrsqrt.pop %v1571
    %v1604 = vrsqrt.pop %v1572
    %v1605 = vrsqrt.pop %v1573
    %v1606 = vrsqrt.pop %v1574
    %v1607 = vrsqrt.pop %v1575
    %v1608 = vrsqrt.pop %v1576
    %v1609 = vrsqrt.pop %v1577
    %v1610 = vrsqrt.pop %v1578
    %v1611 = vrsqrt.pop %v1579
    %v1612 = vrsqrt.pop %v1580
    %v1613 = vrsqrt.pop %v1581
    %v1614 = vrsqrt.pop %v1582
    %v1615 = vrsqrt.pop %v1583
    %v1616 = vrsqrt.pop %v1584
    %v1617 = vrsqrt.pop %v1585
    %v1618 = vrsqrt.pop %v1586
    %v1619 = vrsqrt.pop %v1587
    %v1620 = vrsqrt.pop %v1588
    %v1621 = vrsqrt.pop %v1589
    %v1622 = vrsqrt.pop %v1590
    %v1623 = vrsqrt.pop %v1591
    %v1624 = vrsqrt.pop %v1592
    %v1625 = vrsqrt.pop %v1593
    %v1626 = vrsqrt.pop %v1594
    %v1627 = vrsqrt.pop %v1595
    %v1628 = vrsqrt.pop %v1596
    %v1629 = vrsqrt.pop %v1597
    %v1630 = vrsqrt.pop %v1598
    %v1631 = vrsqrt.pop %v1599
    %v1632 = vrsqrt.pop %v1600
    %v1633 = vmul.f32 %v1537, %v1601
    %v1634 = vmul.f32 %v1538, %v1602
    %v1635 = vmul.f32 %v1539, %v1603
    %v1636 = vmul.f32 %v1540, %v1604
    %v1637 = vmul.f32 %v1541, %v1605
    %v1638 = vmul.f32 %v1542, %v1606
    %v1639 = vmul.f32 %v1543, %v1607
    %v1640 = vmul.f32 %v1544, %v1608
    %v1641 = vmul.f32 %v1545, %v1609
    %v1642 = vmul.f32 %v1546, %v1610
    %v1643 = vmul.f32 %v1547, %v1611
    %v1644 = vmul.f32 %v1548, %v1612
    %v1645 = vmul.f32 %v1549, %v1613
    %v1646 = vmul.f32 %v1550, %v1614
    %v1647 = vmul.f32 %v1551, %v1615
    %v1648 = vmul.f32 %v1552, %v1616
    %v1649 = vmul.f32 %v1553, %v1617
    %v1650 = vmul.f32 %v1554, %v1618
    %v1651 = vmul.f32 %v1555, %v1619
    %v1652 = vmul.f32 %v1556, %v1620
    %v1653 = vmul.f32 %v1557, %v1621
    %v1654 = vmul.f32 %v1558, %v1622
    %v1655 = vmul.f32 %v1559, %v1623
    %v1656 = vmul.f32 %v1560, %v1624
    %v1657 = vmul.f32 %v1561, %v1625
    %v1658 = vmul.f32 %v1562, %v1626
    %v1659 = vmul.f32 %v1563, %v1627
    %v1660 = vmul.f32 %v1564, %v1628
    %v1661 = vmul.f32 %v1565, %v1629
    %v1662 = vmul.f32 %v1566, %v1630
    %v1663 = vmul.f32 %v1567, %v1631
    %v1664 = vmul.f32 %v1568, %v1632
    %v1665 = vlaneseq
    %v1666 = vshrl.u32 %v1665, 7
    %v1667 = vsub.s32 4, %v1666
    %v1668 = vrot.slane %v53, %v1667
    %v1669 = vmul.f32 %v1633, %v1668
    %v1670 = vmul.f32 %v1634, %v1668
    %v1671 = vmul.f32 %v1635, %v1668
    %v1672 = vmul.f32 %v1636, %v1668
    %v1673 = vmul.f32 %v1637, %v1668
    %v1674 = vmul.f32 %v1638, %v1668
    %v1675 = vmul.f32 %v1639, %v1668
    %v1676 = vmul.f32 %v1640, %v1668
    %v1677 = vmul.f32 %v1641, %v1668
    %v1678 = vmul.f32 %v1642, %v1668
    %v1679 = vmul.f32 %v1643, %v1668
    %v1680 = vmul.f32 %v1644, %v1668
    %v1681 = vmul.f32 %v1645, %v1668
    %v1682 = vmul.f32 %v1646, %v1668
    %v1683 = vmul.f32 %v1647, %v1668
    %v1684 = vmul.f32 %v1648, %v1668
    %v1685 = vmul.f32 %v1649, %v1668
    %v1686 = vmul.f32 %v1650, %v1668
    %v1687 = vmul.f32 %v1651, %v1668
    %v1688 = vmul.f32 %v1652, %v1668
    %v1689 = vmul.f32 %v1653, %v1668
    %v1690 = vmul.f32 %v1654, %v1668
    %v1691 = vmul.f32 %v1655, %v1668
    %v1692 = vmul.f32 %v1656, %v1668
    %v1693 = vmul.f32 %v1657, %v1668
    %v1694 = vmul.f32 %v1658, %v1668
    %v1695 = vmul.f32 %v1659, %v1668
    %v1696 = vmul.f32 %v1660, %v1668
    %v1697 = vmul.f32 %v1661, %v1668
    %v1698 = vmul.f32 %v1662, %v1668
    %v1699 = vmul.f32 %v1663, %v1668
    %v1700 = vmul.f32 %v1664, %v1668
    %v1701 = vlaneseq
    %v1702 = vshrl.u32 %v1701, 7
    %v1703 = vsub.s32 5, %v1702
    %v1704 = vrot.slane %v53, %v1703
    %v1705 = vadd.f32 %v1669, %v1704
    %v1706 = vadd.f32 %v1670, %v1704
    %v1707 = vadd.f32 %v1671, %v1704
    %v1708 = vadd.f32 %v1672, %v1704
    %v1709 = vadd.f32 %v1673, %v1704
    %v1710 = vadd.f32 %v1674, %v1704
    %v1711 = vadd.f32 %v1675, %v1704
    %v1712 = vadd.f32 %v1676, %v1704
    %v1713 = vadd.f32 %v1677, %v1704
    %v1714 = vadd.f32 %v1678, %v1704
    %v1715 = vadd.f32 %v1679, %v1704
    %v1716 = vadd.f32 %v1680, %v1704
    %v1717 = vadd.f32 %v1681, %v1704
    %v1718 = vadd.f32 %v1682, %v1704
    %v1719 = vadd.f32 %v1683, %v1704
    %v1720 = vadd.f32 %v1684, %v1704
    %v1721 = vadd.f32 %v1685, %v1704
    %v1722 = vadd.f32 %v1686, %v1704
    %v1723 = vadd.f32 %v1687, %v1704
    %v1724 = vadd.f32 %v1688, %v1704
    %v1725 = vadd.f32 %v1689, %v1704
    %v1726 = vadd.f32 %v1690, %v1704
    %v1727 = vadd.f32 %v1691, %v1704
    %v1728 = vadd.f32 %v1692, %v1704
    %v1729 = vadd.f32 %v1693, %v1704
    %v1730 = vadd.f32 %v1694, %v1704
    %v1731 = vadd.f32 %v1695, %v1704
    %v1732 = vadd.f32 %v1696, %v1704
    %v1733 = vadd.f32 %v1697, %v1704
    %v1734 = vadd.f32 %v1698, %v1704
    %v1735 = vadd.f32 %v1699, %v1704
    %v1736 = vadd.f32 %v1700, %v1704
    %v1737 = vmax.f32 %v1705, 0.0
    %v1738 = vmax.f32 %v1706, 0.0
    %v1739 = vmax.f32 %v1707, 0.0
    %v1740 = vmax.f32 %v1708, 0.0
    %v1741 = vmax.f32 %v1709, 0.0
    %v1742 = vmax.f32 %v1710, 0.0
    %v1743 = vmax.f32 %v1711, 0.0
    %v1744 = vmax.f32 %v1712, 0.0
    %v1745 = vmax.f32 %v1713, 0.0
    %v1746 = vmax.f32 %v1714, 0.0
    %v1747 = vmax.f32 %v1715, 0.0
    %v1748 = vmax.f32 %v1716, 0.0
    %v1749 = vmax.f32 %v1717, 0.0
    %v1750 = vmax.f32 %v1718, 0.0
    %v1751 = vmax.f32 %v1719, 0.0
    %v1752 = vmax.f32 %v1720, 0.0
    %v1753 = vmax.f32 %v1721, 0.0
    %v1754 = vmax.f32 %v1722, 0.0
    %v1755 = vmax.f32 %v1723, 0.0
    %v1756 = vmax.f32 %v1724, 0.0
    %v1757 = vmax.f32 %v1725, 0.0
    %v1758 = vmax.f32 %v1726, 0.0
    %v1759 = vmax.f32 %v1727, 0.0
    %v1760 = vmax.f32 %v1728, 0.0
    %v1761 = vmax.f32 %v1729, 0.0
    %v1762 = vmax.f32 %v1730, 0.0
    %v1763 = vmax.f32 %v1731, 0.0
    %v1764 = vmax.f32 %v1732, 0.0
    %v1765 = vmax.f32 %v1733, 0.0
    %v1766 = vmax.f32 %v1734, 0.0
    %v1767 = vmax.f32 %v1735, 0.0
    %v1768 = vmax.f32 %v1736, 0.0
    %v1769 = vld [vmem:[%s3] sm:$0xff]
    %v1770 = vld [vmem:[%s3 + $0x8] sm:$0xff]
    %v1771 = vld [vmem:[%s3 + $0x10] sm:$0xff]
    %v1772 = vld [vmem:[%s3 + $0x18] sm:$0xff]
    %v1773 = vld [vmem:[%s3 + $0x20] sm:$0xff]
    %v1774 = vld [vmem:[%s3 + $0x28] sm:$0xff]
    %v1775 = vld [vmem:[%s3 + $0x30] sm:$0xff]
    %v1776 = vld [vmem:[%s3 + $0x38] sm:$0xff]
    %v1777 = vld [vmem:[%s3 + $0x40] sm:$0xff]
    %v1778 = vld [vmem:[%s3 + $0x48] sm:$0xff]
    %v1779 = vld [vmem:[%s3 + $0x50] sm:$0xff]
    %v1780 = vld [vmem:[%s3 + $0x58] sm:$0xff]
    %v1781 = vld [vmem:[%s3 + $0x60] sm:$0xff]
    %v1782 = vld [vmem:[%s3 + $0x68] sm:$0xff]
    %v1783 = vld [vmem:[%s3 + $0x70] sm:$0xff]
    %v1784 = vld [vmem:[%s3 + $0x78] sm:$0xff]
    %v1785 = vlaneseq
    %v1786 = vshrl.u32 %v1785, 7
    %v1787 = vsub.s32 6, %v1786
    %v1788 = vrot.slane %v53, %v1787
    %1789 = vmatprep.subr.mxu0 0.0
    %1790 = vmatpush1.msra.mxu0 %v1784
    %1791 = vmatprep.subr.mxu0 0.0
    %1792 = vmatpush1.msra.mxu0 %v1783
    %1793 = vmatprep.subr.mxu0 0.0
    %1794 = vmatpush1.msra.mxu0 %v1782
    %1795 = vmatprep.subr.mxu0 0.0
    %1796 = vmatpush1.msra.mxu0 %v1781
    %1797 = vmatprep.subr.mxu0 0.0
    %1798 = vmatpush1.msra.mxu0 %v1780
    %1799 = vmatprep.subr.mxu0 0.0
    %1800 = vmatpush1.msra.mxu0 %v1779
    %1801 = vmatprep.subr.mxu0 0.0
    %1802 = vmatpush1.msra.mxu0 %v1778
    %1803 = vmatprep.subr.mxu0 0.0
    %1804 = vmatpush1.msra.mxu0 %v1777
    %1805 = vmatprep.subr.mxu0 0.0
    %1806 = vmatpush1.msra.mxu0 %v1776
    %1807 = vmatprep.subr.mxu0 0.0
    %1808 = vmatpush1.msra.mxu0 %v1775
    %1809 = vmatprep.subr.mxu0 0.0
    %1810 = vmatpush1.msra.mxu0 %v1774
    %1811 = vmatprep.subr.mxu0 0.0
    %1812 = vmatpush1.msra.mxu0 %v1773
    %1813 = vmatprep.subr.mxu0 0.0
    %1814 = vmatpush1.msra.mxu0 %v1772
    %1815 = vmatprep.subr.mxu0 0.0
    %1816 = vmatpush1.msra.mxu0 %v1771
    %1817 = vmatprep.subr.mxu0 0.0
    %1818 = vmatpush1.msra.mxu0 %v1770
    %1819 = vmatprep.subr.mxu0 0.0
    %1820 = vmatpush1.msra.mxu0 %v1769
    %1821 = vmatprep.subr.mxu0 0.0
    %1822 = vmatpush2.msra.mxu0 0.0
    %1823 = vmatprep.subr.mxu0 0.0
    %1824 = vmatpush2.msra.mxu0 0.0
    %1825 = vmatprep.subr.mxu0 0.0
    %1826 = vmatpush2.msra.mxu0 0.0
    %1827 = vmatprep.subr.mxu0 0.0
    %1828 = vmatpush2.msra.mxu0 0.0
    %1829 = vmatprep.subr.mxu0 0.0
    %1830 = vmatpush2.msra.mxu0 0.0
    %1831 = vmatprep.subr.mxu0 0.0
    %1832 = vmatpush2.msra.mxu0 0.0
    %1833 = vmatprep.subr.mxu0 0.0
    %1834 = vmatpush2.msra.mxu0 0.0
    %1835 = vmatprep.subr.mxu0 0.0
    %1836 = vmatpush2.msra.mxu0 0.0
    %1837 = vmatprep.subr.mxu0 0.0
    %1838 = vmatpush2.msra.mxu0 0.0
    %1839 = vmatprep.subr.mxu0 0.0
    %1840 = vmatpush2.msra.mxu0 0.0
    %1841 = vmatprep.subr.mxu0 0.0
    %1842 = vmatpush2.msra.mxu0 0.0
    %1843 = vmatprep.subr.mxu0 0.0
    %1844 = vmatpush2.msra.mxu0 0.0
    %1845 = vmatprep.subr.mxu0 0.0
    %1846 = vmatpush2.msra.mxu0 0.0
    %1847 = vmatprep.subr.mxu0 0.0
    %1848 = vmatpush2.msra.mxu0 0.0
    %1849 = vmatprep.subr.mxu0 0.0
    %1850 = vmatpush2.msra.mxu0 0.0
    %1851 = vmatprep.subr.mxu0 0.0
    %1852 = vmatpush2.msra.mxu0 0.0
    %1853 = vmatprep.mubr.f32.mxu0 0.0
    %1854 = vmatmul.mubr.f32.gmra.mxu0 %v1737
    %v1855 = vpop.f32.mrf.mxu0
    %v1856 = vadd.f32 %v1788, %v1855
    %v1857 = vpop.f32.mrf.mxu0
    %1858 = vmatprep.mubr.f32.mxu0 0.0
    %1859 = vmatmul.mubr.f32.gmra.mxu0 %v1738
    %v1860 = vpop.f32.mrf.mxu0
    %v1861 = vadd.f32 %v1788, %v1860
    %v1862 = vpop.f32.mrf.mxu0
    %1863 = vmatprep.mubr.f32.mxu0 0.0
    %1864 = vmatmul.mubr.f32.gmra.mxu0 %v1739
    %v1865 = vpop.f32.mrf.mxu0
    %v1866 = vadd.f32 %v1788, %v1865
    %v1867 = vpop.f32.mrf.mxu0
    %1868 = vmatprep.mubr.f32.mxu0 0.0
    %1869 = vmatmul.mubr.f32.gmra.mxu0 %v1740
    %v1870 = vpop.f32.mrf.mxu0
    %v1871 = vadd.f32 %v1788, %v1870
    %v1872 = vpop.f32.mrf.mxu0
    %1873 = vmatprep.mubr.f32.mxu0 0.0
    %1874 = vmatmul.mubr.f32.gmra.mxu0 %v1741
    %v1875 = vpop.f32.mrf.mxu0
    %v1876 = vadd.f32 %v1788, %v1875
    %v1877 = vpop.f32.mrf.mxu0
    %1878 = vmatprep.mubr.f32.mxu0 0.0
    %1879 = vmatmul.mubr.f32.gmra.mxu0 %v1742
    %v1880 = vpop.f32.mrf.mxu0
    %v1881 = vadd.f32 %v1788, %v1880
    %v1882 = vpop.f32.mrf.mxu0
    %1883 = vmatprep.mubr.f32.mxu0 0.0
    %1884 = vmatmul.mubr.f32.gmra.mxu0 %v1743
    %v1885 = vpop.f32.mrf.mxu0
    %v1886 = vadd.f32 %v1788, %v1885
    %v1887 = vpop.f32.mrf.mxu0
    %1888 = vmatprep.mubr.f32.mxu0 0.0
    %1889 = vmatmul.mubr.f32.gmra.mxu0 %v1744
    %v1890 = vpop.f32.mrf.mxu0
    %v1891 = vadd.f32 %v1788, %v1890
    %v1892 = vpop.f32.mrf.mxu0
    %1893 = vmatprep.mubr.f32.mxu0 0.0
    %1894 = vmatmul.mubr.f32.gmra.mxu0 %v1745
    %v1895 = vpop.f32.mrf.mxu0
    %v1896 = vadd.f32 %v1788, %v1895
    %v1897 = vpop.f32.mrf.mxu0
    %1898 = vmatprep.mubr.f32.mxu0 0.0
    %1899 = vmatmul.mubr.f32.gmra.mxu0 %v1746
    %v1900 = vpop.f32.mrf.mxu0
    %v1901 = vadd.f32 %v1788, %v1900
    %v1902 = vpop.f32.mrf.mxu0
    %1903 = vmatprep.mubr.f32.mxu0 0.0
    %1904 = vmatmul.mubr.f32.gmra.mxu0 %v1747
    %v1905 = vpop.f32.mrf.mxu0
    %v1906 = vadd.f32 %v1788, %v1905
    %v1907 = vpop.f32.mrf.mxu0
    %1908 = vmatprep.mubr.f32.mxu0 0.0
    %1909 = vmatmul.mubr.f32.gmra.mxu0 %v1748
    %v1910 = vpop.f32.mrf.mxu0
    %v1911 = vadd.f32 %v1788, %v1910
    %v1912 = vpop.f32.mrf.mxu0
    %1913 = vmatprep.mubr.f32.mxu0 0.0
    %1914 = vmatmul.mubr.f32.gmra.mxu0 %v1749
    %v1915 = vpop.f32.mrf.mxu0
    %v1916 = vadd.f32 %v1788, %v1915
    %v1917 = vpop.f32.mrf.mxu0
    %1918 = vmatprep.mubr.f32.mxu0 0.0
    %1919 = vmatmul.mubr.f32.gmra.mxu0 %v1750
    %v1920 = vpop.f32.mrf.mxu0
    %v1921 = vadd.f32 %v1788, %v1920
    %v1922 = vpop.f32.mrf.mxu0
    %1923 = vmatprep.mubr.f32.mxu0 0.0
    %1924 = vmatmul.mubr.f32.gmra.mxu0 %v1751
    %v1925 = vpop.f32.mrf.mxu0
    %v1926 = vadd.f32 %v1788, %v1925
    %v1927 = vpop.f32.mrf.mxu0
    %1928 = vmatprep.mubr.f32.mxu0 0.0
    %1929 = vmatmul.mubr.f32.gmra.mxu0 %v1752
    %v1930 = vpop.f32.mrf.mxu0
    %v1931 = vadd.f32 %v1788, %v1930
    %v1932 = vpop.f32.mrf.mxu0
    %1933 = vmatprep.mubr.f32.mxu0 0.0
    %1934 = vmatmul.mubr.f32.gmra.mxu0 %v1753
    %v1935 = vpop.f32.mrf.mxu0
    %v1936 = vadd.f32 %v1788, %v1935
    %v1937 = vpop.f32.mrf.mxu0
    %1938 = vmatprep.mubr.f32.mxu0 0.0
    %1939 = vmatmul.mubr.f32.gmra.mxu0 %v1754
    %v1940 = vpop.f32.mrf.mxu0
    %v1941 = vadd.f32 %v1788, %v1940
    %v1942 = vpop.f32.mrf.mxu0
    %1943 = vmatprep.mubr.f32.mxu0 0.0
    %1944 = vmatmul.mubr.f32.gmra.mxu0 %v1755
    %v1945 = vpop.f32.mrf.mxu0
    %v1946 = vadd.f32 %v1788, %v1945
    %v1947 = vpop.f32.mrf.mxu0
    %1948 = vmatprep.mubr.f32.mxu0 0.0
    %1949 = vmatmul.mubr.f32.gmra.mxu0 %v1756
    %v1950 = vpop.f32.mrf.mxu0
    %v1951 = vadd.f32 %v1788, %v1950
    %v1952 = vpop.f32.mrf.mxu0
    %1953 = vmatprep.mubr.f32.mxu0 0.0
    %1954 = vmatmul.mubr.f32.gmra.mxu0 %v1757
    %v1955 = vpop.f32.mrf.mxu0
    %v1956 = vadd.f32 %v1788, %v1955
    %v1957 = vpop.f32.mrf.mxu0
    %1958 = vmatprep.mubr.f32.mxu0 0.0
    %1959 = vmatmul.mubr.f32.gmra.mxu0 %v1758
    %v1960 = vpop.f32.mrf.mxu0
    %v1961 = vadd.f32 %v1788, %v1960
    %v1962 = vpop.f32.mrf.mxu0
    %1963 = vmatprep.mubr.f32.mxu0 0.0
    %1964 = vmatmul.mubr.f32.gmra.mxu0 %v1759
    %v1965 = vpop.f32.mrf.mxu0
    %v1966 = vadd.f32 %v1788, %v1965
    %v1967 = vpop.f32.mrf.mxu0
    %1968 = vmatprep.mubr.f32.mxu0 0.0
    %1969 = vmatmul.mubr.f32.gmra.mxu0 %v1760
    %v1970 = vpop.f32.mrf.mxu0
    %v1971 = vadd.f32 %v1788, %v1970
    %v1972 = vpop.f32.mrf.mxu0
    %1973 = vmatprep.mubr.f32.mxu0 0.0
    %1974 = vmatmul.mubr.f32.gmra.mxu0 %v1761
    %v1975 = vpop.f32.mrf.mxu0
    %v1976 = vadd.f32 %v1788, %v1975
    %v1977 = vpop.f32.mrf.mxu0
    %1978 = vmatprep.mubr.f32.mxu0 0.0
    %1979 = vmatmul.mubr.f32.gmra.mxu0 %v1762
    %v1980 = vpop.f32.mrf.mxu0
    %v1981 = vadd.f32 %v1788, %v1980
    %v1982 = vpop.f32.mrf.mxu0
    %1983 = vmatprep.mubr.f32.mxu0 0.0
    %1984 = vmatmul.mubr.f32.gmra.mxu0 %v1763
    %v1985 = vpop.f32.mrf.mxu0
    %v1986 = vadd.f32 %v1788, %v1985
    %v1987 = vpop.f32.mrf.mxu0
    %1988 = vmatprep.mubr.f32.mxu0 0.0
    %1989 = vmatmul.mubr.f32.gmra.mxu0 %v1764
    %v1990 = vpop.f32.mrf.mxu0
    %v1991 = vadd.f32 %v1788, %v1990
    %v1992 = vpop.f32.mrf.mxu0
    %1993 = vmatprep.mubr.f32.mxu0 0.0
    %1994 = vmatmul.mubr.f32.gmra.mxu0 %v1765
    %v1995 = vpop.f32.mrf.mxu0
    %v1996 = vadd.f32 %v1788, %v1995
    %v1997 = vpop.f32.mrf.mxu0
    %1998 = vmatprep.mubr.f32.mxu0 0.0
    %1999 = vmatmul.mubr.f32.gmra.mxu0 %v1766
    %v2000 = vpop.f32.mrf.mxu0
    %v2001 = vadd.f32 %v1788, %v2000
    %v2002 = vpop.f32.mrf.mxu0
    %2003 = vmatprep.mubr.f32.mxu0 0.0
    %2004 = vmatmul.mubr.f32.gmra.mxu0 %v1767
    %v2005 = vpop.f32.mrf.mxu0
    %v2006 = vadd.f32 %v1788, %v2005
    %v2007 = vpop.f32.mrf.mxu0
    %2008 = vmatprep.mubr.f32.mxu0 0.0
    %2009 = vmatmul.mubr.f32.gmra.mxu0 %v1768
    %v2010 = vpop.f32.mrf.mxu0
    %v2011 = vadd.f32 %v1788, %v2010
    %v2012 = vpop.f32.mrf.mxu0
    %2013 = vdwg.mxu0
    %v2014 = vtanh.pop %v1856
    %v2015 = vtanh.pop %v1861
    %v2016 = vtanh.pop %v1866
    %v2017 = vtanh.pop %v1871
    %v2018 = vtanh.pop %v1876
    %v2019 = vtanh.pop %v1881
    %v2020 = vtanh.pop %v1886
    %v2021 = vtanh.pop %v1891
    %v2022 = vtanh.pop %v1896
    %v2023 = vtanh.pop %v1901
    %v2024 = vtanh.pop %v1906
    %v2025 = vtanh.pop %v1911
    %v2026 = vtanh.pop %v1916
    %v2027 = vtanh.pop %v1921
    %v2028 = vtanh.pop %v1926
    %v2029 = vtanh.pop %v1931
    %v2030 = vtanh.pop %v1936
    %v2031 = vtanh.pop %v1941
    %v2032 = vtanh.pop %v1946
    %v2033 = vtanh.pop %v1951
    %v2034 = vtanh.pop %v1956
    %v2035 = vtanh.pop %v1961
    %v2036 = vtanh.pop %v1966
    %v2037 = vtanh.pop %v1971
    %v2038 = vtanh.pop %v1976
    %v2039 = vtanh.pop %v1981
    %v2040 = vtanh.pop %v1986
    %v2041 = vtanh.pop %v1991
    %v2042 = vtanh.pop %v1996
    %v2043 = vtanh.pop %v2001
    %v2044 = vtanh.pop %v2006
    %v2045 = vtanh.pop %v2011
    %2046 = vst [vmem:[#allocation2] sm:$0xff] %v2014
    %2047 = vst [vmem:[#allocation2 + $0x8] sm:$0xff] %v2015
    %2048 = vst [vmem:[#allocation2 + $0x10] sm:$0xff] %v2016
    %2049 = vst [vmem:[#allocation2 + $0x18] sm:$0xff] %v2017
    %2050 = vst [vmem:[#allocation2 + $0x20] sm:$0xff] %v2018
    %2051 = vst [vmem:[#allocation2 + $0x28] sm:$0xff] %v2019
    %2052 = vst [vmem:[#allocation2 + $0x30] sm:$0xff] %v2020
    %2053 = vst [vmem:[#allocation2 + $0x38] sm:$0xff] %v2021
    %2054 = vst [vmem:[#allocation2 + $0x40] sm:$0xff] %v2022
    %2055 = vst [vmem:[#allocation2 + $0x48] sm:$0xff] %v2023
    %2056 = vst [vmem:[#allocation2 + $0x50] sm:$0xff] %v2024
    %2057 = vst [vmem:[#allocation2 + $0x58] sm:$0xff] %v2025
    %2058 = vst [vmem:[#allocation2 + $0x60] sm:$0xff] %v2026
    %2059 = vst [vmem:[#allocation2 + $0x68] sm:$0xff] %v2027
    %2060 = vst [vmem:[#allocation2 + $0x70] sm:$0xff] %v2028
    %2061 = vst [vmem:[#allocation2 + $0x78] sm:$0xff] %v2029
    %2062 = vst [vmem:[#allocation2 + $0x80] sm:$0xff] %v2030
    %2063 = vst [vmem:[#allocation2 + $0x88] sm:$0xff] %v2031
    %2064 = vst [vmem:[#allocation2 + $0x90] sm:$0xff] %v2032
    %2065 = vst [vmem:[#allocation2 + $0x98] sm:$0xff] %v2033
    %2066 = vst [vmem:[#allocation2 + $0xa0] sm:$0xff] %v2034
    %2067 = vst [vmem:[#allocation2 + $0xa8] sm:$0xff] %v2035
    %2068 = vst [vmem:[#allocation2 + $0xb0] sm:$0xff] %v2036
    %2069 = vst [vmem:[#allocation2 + $0xb8] sm:$0xff] %v2037
    %2070 = vst [vmem:[#allocation2 + $0xc0] sm:$0xff] %v2038
    %2071 = vst [vmem:[#allocation2 + $0xc8] sm:$0xff] %v2039
    %2072 = vst [vmem:[#allocation2 + $0xd0] sm:$0xff] %v2040
    %2073 = vst [vmem:[#allocation2 + $0xd8] sm:$0xff] %v2041
    %2074 = vst [vmem:[#allocation2 + $0xe0] sm:$0xff] %v2042
    %2075 = vst [vmem:[#allocation2 + $0xe8] sm:$0xff] %v2043
    %2076 = vst [vmem:[#allocation2 + $0xf0] sm:$0xff] %v2044
    %2077 = vst [vmem:[#allocation2 + $0xf8] sm:$0xff] %v2045
    // Predicated region
    $region22: #{tpu_custom_call.1} parent=1 // pred_check
      _
    $region23: #{tpu_custom_call.1} parent=1 // pred_check_branch
      %2079 = sbr.rel (0) target = $region25
    $region24: #{tpu_custom_call.1} parent=1 // pred_region
      %s2081 = ssub.s32 4096, 4096
      %2082 = vsyncadd [#allocation3], %s2081
      %s2083 = sshll.u32 [#allocation2], 4
      %s2084 = int_to_ptr.vmem [resolvable:$true] %s2083
      %2089 = dma.vmem_to_hbm [thread:$0]  %s2084, 4096, %s5, [#allocation3], 128, 128, 8
    $region25: #{tpu_custom_call.1} parent=1 // pred_fallthru
      _
    // Predicated region
    $region26: #{tpu_custom_call.1} parent=1 // pred_check
      _
    $region27: #{tpu_custom_call.1} parent=1 // pred_check_branch
      %2091 = sbr.rel (0) target = $region29
    $region28: #{tpu_custom_call.1} parent=1 // pred_region
      %2092 = dma.done [#allocation3], 4096
    $region29: #{tpu_custom_call.1} parent=1 // pred_fallthru
      _
    %2093 = vsyncpa [#allocation3], 1

</llo_original>
